<compile_context>
chip_gen: v6e
topology: v6e:2x2x1
jax: 0.10.0
libtpu: 0.0.40
codegen_flags: <defaults>
</compile_context>

<pallas_src>
import functools

import jax
import jax.numpy as jnp
from jax import lax
from jax.experimental import pallas as pl
from jax.experimental.pallas import tpu as pltpu


def _round_up(n, m):
    return ((n + m - 1) // m) * m


def lstm_kernel(x_ref, wih0_ref, whh0_ref, b0_ref,
                wih1_ref, whh1_ref, b1_ref,
                wdec_ref, bdec_ref,
                out_ref,
                xp_ref, h0seq_ref, h0_ref, c0_ref, h1_ref, c1_ref):
    """One time chunk of the 2-layer LSTM + decoder.

    Grid: (num_chunks,) over time, sequential ("arbitrary").  LSTM state
    persists in VMEM scratch across grid steps.

    x_ref:    (Tc*Bp, F)   time-major chunk of the input (row = t*Bp + b)
    wih0_ref: (F,  4Hg)    layer-0 input weights (packed gates [i|f|g|o]*Hg)
    whh0_ref: (Hg, 4Hg)    layer-0 recurrent weights
    b0_ref:   (1,  4Hg)    layer-0 bias (b_ih + b_hh), f32
    wih1/whh1/b1:          layer-1 equivalents
    wdec_ref: (Hg, Cp)     decoder weights;  bdec_ref: (1, Cp) f32
    out_ref:  (Bp, Cp)     decoder(h1); the last grid step's value survives
    xp_ref:   (Tc*Bp, 4Hg) f32 scratch: gate pre-activations (reused per layer)
    h0seq_ref:(Tc*Bp, Hg)  f32 scratch: this chunk's layer-0 hidden sequence
    h0/c0/h1/c1_ref: (Bp, Hg) f32 scratch: carried LSTM state
    """
    Bp = out_ref.shape[0]
    Tc = x_ref.shape[0] // Bp
    Hg = whh0_ref.shape[0]
    f32 = jnp.float32

    @pl.when(pl.program_id(0) == 0)
    def _init_state():
        h0_ref[...] = jnp.zeros_like(h0_ref)
        c0_ref[...] = jnp.zeros_like(c0_ref)
        h1_ref[...] = jnp.zeros_like(h1_ref)
        c1_ref[...] = jnp.zeros_like(c1_ref)

    def _sigmoid(z):
        # Exact rewrite sigmoid(z) = 0.5*(1 + tanh(z/2)): one EUP tanh + cheap
        # VPU mul/add (same unit class as the other gate activations).
        return 0.5 * jnp.tanh(0.5 * z) + 0.5

    def run_layer(whh_ref, h_ref, c_ref, store_seq):
        whh = whh_ref[...]   # (Hg, 4Hg): ~4 vregs, loaded once per layer/chunk

        def step(t, carry):
            h, c = carry
            row = pl.multiple_of(t * Bp, Bp)
            gates = xp_ref[pl.ds(row, Bp), :] + jnp.dot(
                h.astype(whh.dtype), whh, preferred_element_type=f32)
            i_g = _sigmoid(gates[:, 0 * Hg:1 * Hg])
            f_g = _sigmoid(gates[:, 1 * Hg:2 * Hg])
            g_g = jnp.tanh(gates[:, 2 * Hg:3 * Hg])
            o_g = _sigmoid(gates[:, 3 * Hg:4 * Hg])
            c_new = f_g * c + i_g * g_g
            h_new = o_g * jnp.tanh(c_new)
            if store_seq:
                h0seq_ref[pl.ds(row, Bp), :] = h_new
            return (h_new, c_new)

        # Capped unroll: keeps LLO scheduling visibility without blowing up
        # code size / vreg live ranges at realistic sequence lengths.
        h_last, c_last = lax.fori_loop(0, Tc, step, (h_ref[...], c_ref[...]),
                                       unroll=4)
        h_ref[...] = h_last
        c_ref[...] = c_last
        return h_last

    # Layer 0: one hoisted input projection for the whole chunk, then recur.
    xp_ref[...] = (jnp.dot(x_ref[...], wih0_ref[...],
                           preferred_element_type=f32) + b0_ref[...])
    run_layer(whh0_ref, h0_ref, c0_ref, store_seq=True)

    # Layer 1: project this chunk's layer-0 hidden sequence in one matmul.
    wih1 = wih1_ref[...]
    xp_ref[...] = (jnp.dot(h0seq_ref[...].astype(wih1.dtype), wih1,
                           preferred_element_type=f32) + b1_ref[...])
    h1_last = run_layer(whh1_ref, h1_ref, c1_ref, store_seq=False)

    # Decoder on the current last hidden state.  Only the final grid step's
    # writeback survives (== torch output[:, -1, :] -> Linear).
    wdec = wdec_ref[...]
    out_ref[...] = (jnp.dot(h1_last.astype(wdec.dtype), wdec,
                            preferred_element_type=f32) + bdec_ref[...])


@functools.partial(jax.jit, static_argnames=("class_num", "time_chunk"))
def lstm_forward(x, params, *, class_num, time_chunk=64):
    """x: (B, L, F) batch-first (PyTorch convention). Returns (B, class_num)."""
    B, L, F = x.shape
    Bp = max(8, _round_up(B, 8))          # sublane-aligned batch
    Hg = params["whh0"].shape[0]          # packed per-gate width
    Gp = params["whh0"].shape[1]          # 4*Hg (multiple of 128 lanes)
    Cp = params["wdec"].shape[1]          # lane-aligned class dim
    cdt = params["wih0"].dtype            # matmul-operand dtype (f32 or bf16)

    # Time-chunk size = largest divisor of L that is <= time_chunk.  (Padding
    # the time axis is not an option: zero inputs still drive the gates
    # through the biases and would change the recurrence.)
    Tc = min(time_chunk, L)
    while L % Tc:
        Tc -= 1
    nk = L // Tc

    # Batch-pad + cast + go time-major.  XLA fuses pad/transpose/reshape into
    # a single copy of x; padded batch rows never interact and are dropped.
    x_pad = jnp.pad(x.astype(cdt), ((0, Bp - B), (0, 0), (0, 0)))
    x2d = jnp.transpose(x_pad, (1, 0, 2)).reshape(L * Bp, F)

    full = lambda a: pl.BlockSpec(a.shape, lambda k: (0, 0))  # resident weight
    out = pl.pallas_call(
        lstm_kernel,
        out_shape=jax.ShapeDtypeStruct((Bp, Cp), jnp.float32),
        grid=(nk,),
        in_specs=[
            pl.BlockSpec((Tc * Bp, F), lambda k: (k, 0)),   # streamed x chunks
            full(params["wih0"]), full(params["whh0"]), full(params["b0"]),
            full(params["wih1"]), full(params["whh1"]), full(params["b1"]),
            full(params["wdec"]), full(params["bdec"]),
        ],
        out_specs=pl.BlockSpec((Bp, Cp), lambda k: (0, 0)),
        scratch_shapes=[
            pltpu.VMEM((Tc * Bp, Gp), jnp.float32),   # gate pre-activations
            pltpu.VMEM((Tc * Bp, Hg), jnp.float32),   # layer-0 hidden chunk
            pltpu.VMEM((Bp, Hg), jnp.float32),        # h0 (carried)
            pltpu.VMEM((Bp, Hg), jnp.float32),        # c0 (carried)
            pltpu.VMEM((Bp, Hg), jnp.float32),        # h1 (carried)
            pltpu.VMEM((Bp, Hg), jnp.float32),        # c1 (carried)
        ],
        compiler_params=pltpu.CompilerParams(
            dimension_semantics=("arbitrary",)),      # sequential time chunks
    )(x2d,
      params["wih0"], params["whh0"], params["b0"],
      params["wih1"], params["whh1"], params["b1"],
      params["wdec"], params["bdec"])
    return out[:B, :class_num]


def init_params(key, features, hidden_size, class_num):
    """PyTorch-shaped raw params, uniform(-1/sqrt(H), 1/sqrt(H)) init."""
    H, F, C = hidden_size, features, class_num
    k = 1.0 / jnp.sqrt(jnp.float32(H))
    ks = jax.random.split(key, 10)
    u = lambda kk, shape: jax.random.uniform(kk, shape, jnp.float32, -k, k)
    return {
        "w_ih_l0": u(ks[0], (4 * H, F)),
        "w_hh_l0": u(ks[1], (4 * H, H)),
        "b_ih_l0": u(ks[2], (4 * H,)),
        "b_hh_l0": u(ks[3], (4 * H,)),
        "w_ih_l1": u(ks[4], (4 * H, H)),
        "w_hh_l1": u(ks[5], (4 * H, H)),
        "b_ih_l1": u(ks[6], (4 * H,)),
        "b_hh_l1": u(ks[7], (4 * H,)),
        "w_dec":   u(ks[8], (C, H)),
        "b_dec":   u(ks[9], (C,)),
    }


def prepare_params(raw, hidden_size, class_num, dtype=jnp.float32):
    """Transpose to (in, out), combine b_ih+b_hh, and pack gates.

    Packed layout: each gate occupies Hg = round_up(4H,128)/4 lanes so the
    total gate width 4*Hg is a multiple of 128 (for H=32, 4*Hg = 128 exactly).
    Padding is exact: padded hidden units see zero weights and zero bias, so
    their state stays identically zero.  Weights are cast to `dtype`
    (bf16 recommended on v6e/v7x); biases stay f32 (added post-accumulation).
    """
    H = hidden_size
    Hg = _round_up(4 * H, 128) // 4
    Cp = _round_up(class_num, 128)
    f32 = jnp.float32

    def pack_gates(w):                      # (in, 4H) -> (in, 4Hg), packed
        n_in = w.shape[0]
        w = w.reshape(n_in, 4, H)
        w = jnp.pad(w, ((0, 0), (0, 0), (0, Hg - H)))
        return w.reshape(n_in, 4 * Hg)

    def pad_rows(w):                        # (H, .) -> (Hg, .)
        return jnp.pad(w, ((0, Hg - w.shape[0]), (0, 0)))

    b0 = (raw["b_ih_l0"] + raw["b_hh_l0"]).reshape(1, 4 * H)
    b1 = (raw["b_ih_l1"] + raw["b_hh_l1"]).reshape(1, 4 * H)
    return {
        "wih0": pack_gates(raw["w_ih_l0"].T).astype(dtype),            # (F,  4Hg)
        "whh0": pad_rows(pack_gates(raw["w_hh_l0"].T)).astype(dtype),  # (Hg, 4Hg)
        "b0":   pack_gates(b0).astype(f32),                            # (1,  4Hg)
        "wih1": pad_rows(pack_gates(raw["w_ih_l1"].T)).astype(dtype),  # (Hg, 4Hg)
        "whh1": pad_rows(pack_gates(raw["w_hh_l1"].T)).astype(dtype),  # (Hg, 4Hg)
        "b1":   pack_gates(b1).astype(f32),                            # (1,  4Hg)
        "wdec": jnp.pad(raw["w_dec"].T,
                        ((0, Hg - H), (0, Cp - class_num))).astype(dtype),
        "bdec": jnp.pad(raw["b_dec"].reshape(1, -1),
                        ((0, 0), (0, Cp - class_num))).astype(f32),
    }


def lstm_reference(x, raw, hidden_size):
    """Pure-JAX reference with PyTorch LSTM semantics (for the sanity check)."""
    H = hidden_size
    B, L, _ = x.shape

    def cell(x_t, h, c, w_ih, w_hh, b_ih, b_hh):
        gates = x_t @ w_ih.T + h @ w_hh.T + b_ih + b_hh
        i = jax.nn.sigmoid(gates[:, 0:H])
        f = jax.nn.sigmoid(gates[:, H:2 * H])
        g = jnp.tanh(gates[:, 2 * H:3 * H])
        o = jax.nn.sigmoid(gates[:, 3 * H:4 * H])
        c = f * c + i * g
        return o * jnp.tanh(c), c

    h0 = c0 = h1 = c1 = jnp.zeros((B, H), jnp.float32)
    for t in range(L):
        h0, c0 = cell(x[:, t, :], h0, c0, raw["w_ih_l0"], raw["w_hh_l0"],
                      raw["b_ih_l0"], raw["b_hh_l0"])
        h1, c1 = cell(h0, h1, c1, raw["w_ih_l1"], raw["w_hh_l1"],
                      raw["b_ih_l1"], raw["b_hh_l1"])
    return h1 @ raw["w_dec"].T + raw["b_dec"]


if __name__ == "__main__":
    # Small shapes consistent with the module's forward: x is (B, L, features).
    B, L, FEATURES, HIDDEN, CLASSES = 2, 8, 16, 32, 4

    key = jax.random.PRNGKey(0)
    k_x, k_p = jax.random.split(key)
    x = jax.random.normal(k_x, (B, L, FEATURES), dtype=jnp.float32)
    raw = init_params(k_p, FEATURES, HIDDEN, CLASSES)
    ref = lstm_reference(x, raw, HIDDEN)

    # f32 weights; time_chunk=4 -> 2 grid steps, exercising the chunked /
    # carried-state path against the reference.
    params = prepare_params(raw, HIDDEN, CLASSES, dtype=jnp.float32)
    out = lstm_forward(x, params, class_num=CLASSES, time_chunk=4)
    jax.block_until_ready(out)
    assert out.shape == (B, CLASSES) and out.dtype == jnp.float32
    assert bool(jnp.allclose(out, ref, atol=5e-2, rtol=5e-2)), "f32 mismatch"

    # bf16 matmul operands / storage (the v6e/v7x lever); accumulation and all
    # gate math stay f32 inside the kernel.  Looser tolerance for bf16.
    params_bf16 = prepare_params(raw, HIDDEN, CLASSES, dtype=jnp.bfloat16)
    out_bf16 = lstm_forward(x, params_bf16, class_num=CLASSES, time_chunk=4)
    jax.block_until_ready(out_bf16)
    assert bool(jnp.allclose(out_bf16, ref, atol=1e-1, rtol=1e-1)), "bf16 mismatch"

    print("KERNEL_OK")
</pallas_src>

<mosaic_0001>
module attributes {stable_mosaic.version = 11 : i64} {
  func.func @lstm_kernel(%arg0: i32, %arg1: memref<32x16xf32, #tpu.memory_space<vmem>>, %arg2: memref<16x128xf32, #tpu.memory_space<vmem>>, %arg3: memref<32x128xf32, #tpu.memory_space<vmem>>, %arg4: memref<1x128xf32, #tpu.memory_space<vmem>>, %arg5: memref<32x128xf32, #tpu.memory_space<vmem>>, %arg6: memref<32x128xf32, #tpu.memory_space<vmem>>, %arg7: memref<1x128xf32, #tpu.memory_space<vmem>>, %arg8: memref<32x128xf32, #tpu.memory_space<vmem>>, %arg9: memref<1x128xf32, #tpu.memory_space<vmem>>, %arg10: memref<8x128xf32, #tpu.memory_space<vmem>>, %arg11: memref<32x128xf32, #tpu.memory_space<vmem>>, %arg12: memref<32x32xf32, #tpu.memory_space<vmem>>, %arg13: memref<8x32xf32, #tpu.memory_space<vmem>>, %arg14: memref<8x32xf32, #tpu.memory_space<vmem>>, %arg15: memref<8x32xf32, #tpu.memory_space<vmem>>, %arg16: memref<8x32xf32, #tpu.memory_space<vmem>>) attributes {dimension_semantics = [#tpu.dimension_semantics<arbitrary>], iteration_bounds = array<i64: 2>, scalar_prefetch = 0 : i64, scratch_operands = 6 : i64, tpu.core_type = #tpu.core_type<tc>, window_params = [{transform_indices = @transform_0, window_bounds = array<i64: 32, 16>}, {pipeline_mode = #tpu.pipeline_mode<synchronous>, transform_indices = @transform_1, window_bounds = array<i64: 16, 128>}, {pipeline_mode = #tpu.pipeline_mode<synchronous>, transform_indices = @transform_2, window_bounds = array<i64: 32, 128>}, {pipeline_mode = #tpu.pipeline_mode<synchronous>, transform_indices = @transform_3, window_bounds = array<i64: 1, 128>}, {pipeline_mode = #tpu.pipeline_mode<synchronous>, transform_indices = @transform_4, window_bounds = array<i64: 32, 128>}, {pipeline_mode = #tpu.pipeline_mode<synchronous>, transform_indices = @transform_5, window_bounds = array<i64: 32, 128>}, {pipeline_mode = #tpu.pipeline_mode<synchronous>, transform_indices = @transform_6, window_bounds = array<i64: 1, 128>}, {pipeline_mode = #tpu.pipeline_mode<synchronous>, transform_indices = @transform_7, window_bounds = array<i64: 32, 128>}, {pipeline_mode = #tpu.pipeline_mode<synchronous>, transform_indices = @transform_8, window_bounds = array<i64: 1, 128>}, {pipeline_mode = #tpu.pipeline_mode<synchronous>, transform_indices = @transform_9, window_bounds = array<i64: 8, 128>}]} {
    %c0_i32 = arith.constant 0 : i32
    %0 = arith.cmpi eq, %arg0, %c0_i32 : i32
    %1 = arith.extui %0 : i1 to i32
    %c0_i32_0 = arith.constant 0 : i32
    %2 = arith.cmpi ne, %1, %c0_i32_0 : i32
    scf.if %2 {
      %cst_149 = arith.constant 0.000000e+00 : f32
      %337 = vector.broadcast %cst_149 : f32 to vector<8x32xf32>
      %c0_150 = arith.constant 0 : index
      %c0_151 = arith.constant 0 : index
      %338 = vector.load %arg13[%c0_150, %c0_151] : memref<8x32xf32, #tpu.memory_space<vmem>>, vector<8x32xf32>
      tpu.vector_store %arg13[%c0_150, %c0_151], %337 {strides = array<i32>} : memref<8x32xf32, #tpu.memory_space<vmem>>, vector<8x32xf32>,
      %cst_152 = arith.constant 0.000000e+00 : f32
      %339 = vector.broadcast %cst_152 : f32 to vector<8x32xf32>
      %c0_153 = arith.constant 0 : index
      %c0_154 = arith.constant 0 : index
      %340 = vector.load %arg14[%c0_153, %c0_154] : memref<8x32xf32, #tpu.memory_space<vmem>>, vector<8x32xf32>
      tpu.vector_store %arg14[%c0_153, %c0_154], %339 {strides = array<i32>} : memref<8x32xf32, #tpu.memory_space<vmem>>, vector<8x32xf32>,
      %cst_155 = arith.constant 0.000000e+00 : f32
      %341 = vector.broadcast %cst_155 : f32 to vector<8x32xf32>
      %c0_156 = arith.constant 0 : index
      %c0_157 = arith.constant 0 : index
      %342 = vector.load %arg15[%c0_156, %c0_157] : memref<8x32xf32, #tpu.memory_space<vmem>>, vector<8x32xf32>
      tpu.vector_store %arg15[%c0_156, %c0_157], %341 {strides = array<i32>} : memref<8x32xf32, #tpu.memory_space<vmem>>, vector<8x32xf32>,
      %cst_158 = arith.constant 0.000000e+00 : f32
      %343 = vector.broadcast %cst_158 : f32 to vector<8x32xf32>
      %c0_159 = arith.constant 0 : index
      %c0_160 = arith.constant 0 : index
      %344 = vector.load %arg16[%c0_159, %c0_160] : memref<8x32xf32, #tpu.memory_space<vmem>>, vector<8x32xf32>
      tpu.vector_store %arg16[%c0_159, %c0_160], %343 {strides = array<i32>} : memref<8x32xf32, #tpu.memory_space<vmem>>, vector<8x32xf32>,
    } else {
    }
    %c0 = arith.constant 0 : index
    %c0_1 = arith.constant 0 : index
    %3 = vector.load %arg1[%c0, %c0_1] : memref<32x16xf32, #tpu.memory_space<vmem>>, vector<32x16xf32>
    %c0_2 = arith.constant 0 : index
    %c0_3 = arith.constant 0 : index
    %4 = vector.load %arg2[%c0_2, %c0_3] : memref<16x128xf32, #tpu.memory_space<vmem>>, vector<16x128xf32>
    %cst = arith.constant dense<0.000000e+00> : vector<32x128xf32>
    %5 = tpu.matmul %3, %4, %cst {dimension_numbers = #tpu.dot_dimension_numbers<[1], [0], [0], [1], [0, 0, 1, 1], [], []>} : vector<32x16xf32>, vector<16x128xf32>, vector<32x128xf32> -> vector<32x128xf32>
    %c0_4 = arith.constant 0 : index
    %c0_5 = arith.constant 0 : index
    %6 = vector.load %arg4[%c0_4, %c0_5] : memref<1x128xf32, #tpu.memory_space<vmem>>, vector<1x128xf32>
    %7 = vector.broadcast %6 : vector<1x128xf32> to vector<32x128xf32>
    %8 = arith.addf %5, %7 : vector<32x128xf32>
    %c0_6 = arith.constant 0 : index
    %c0_7 = arith.constant 0 : index
    %9 = vector.load %arg11[%c0_6, %c0_7] : memref<32x128xf32, #tpu.memory_space<vmem>>, vector<32x128xf32>
    tpu.vector_store %arg11[%c0_6, %c0_7], %8 {strides = array<i32>} : memref<32x128xf32, #tpu.memory_space<vmem>>, vector<32x128xf32>,
    %c0_8 = arith.constant 0 : index
    %c0_9 = arith.constant 0 : index
    %10 = vector.load %arg3[%c0_8, %c0_9] : memref<32x128xf32, #tpu.memory_space<vmem>>, vector<32x128xf32>
    %c0_10 = arith.constant 0 : index
    %c0_11 = arith.constant 0 : index
    %11 = vector.load %arg13[%c0_10, %c0_11] : memref<8x32xf32, #tpu.memory_space<vmem>>, vector<8x32xf32>
    %c0_12 = arith.constant 0 : index
    %c0_13 = arith.constant 0 : index
    %12 = vector.load %arg14[%c0_12, %c0_13] : memref<8x32xf32, #tpu.memory_space<vmem>>, vector<8x32xf32>
    %c0_i32_14 = arith.constant 0 : i32
    %c8_i32 = arith.constant 8 : i32
    %13 = arith.muli %c0_i32_14, %c8_i32 : i32
    %14 = tpu.assume_multiple %13, 8 : i32
    %15 = arith.index_cast %14 : i32 to index
    %c0_15 = arith.constant 0 : index
    %16 = vector.load %arg11[%15, %c0_15] : memref<32x128xf32, #tpu.memory_space<vmem>>, vector<8x128xf32>
    %cst_16 = arith.constant dense<0.000000e+00> : vector<8x128xf32>
    %17 = tpu.matmul %11, %10, %cst_16 {dimension_numbers = #tpu.dot_dimension_numbers<[1], [0], [0], [1], [0, 0, 1, 1], [], []>} : vector<8x32xf32>, vector<32x128xf32>, vector<8x128xf32> -> vector<8x128xf32>
    %18 = arith.addf %16, %17 : vector<8x128xf32>
    %19 = vector.extract_strided_slice %18 {offsets = [0, 0], sizes = [8, 32], strides = [1, 1]} : vector<8x128xf32> to vector<8x32xf32>
    %cst_17 = arith.constant 5.000000e-01 : f32
    %20 = vector.broadcast %cst_17 : f32 to vector<8x32xf32>
    %21 = arith.mulf %20, %19 : vector<8x32xf32>
    %22 = math.tanh %21 : vector<8x32xf32>
    %cst_18 = arith.constant 5.000000e-01 : f32
    %23 = vector.broadcast %cst_18 : f32 to vector<8x32xf32>
    %24 = arith.mulf %23, %22 : vector<8x32xf32>
    %cst_19 = arith.constant 5.000000e-01 : f32
    %25 = vector.broadcast %cst_19 : f32 to vector<8x32xf32>
    %26 = arith.addf %24, %25 : vector<8x32xf32>
    %27 = vector.extract_strided_slice %18 {offsets = [0, 32], sizes = [8, 32], strides = [1, 1]} : vector<8x128xf32> to vector<8x32xf32>
    %cst_20 = arith.constant 5.000000e-01 : f32
    %28 = vector.broadcast %cst_20 : f32 to vector<8x32xf32>
    %29 = arith.mulf %28, %27 : vector<8x32xf32>
    %30 = math.tanh %29 : vector<8x32xf32>
    %cst_21 = arith.constant 5.000000e-01 : f32
    %31 = vector.broadcast %cst_21 : f32 to vector<8x32xf32>
    %32 = arith.mulf %31, %30 : vector<8x32xf32>
    %cst_22 = arith.constant 5.000000e-01 : f32
    %33 = vector.broadcast %cst_22 : f32 to vector<8x32xf32>
    %34 = arith.addf %32, %33 : vector<8x32xf32>
    %35 = vector.extract_strided_slice %18 {offsets = [0, 64], sizes = [8, 32], strides = [1, 1]} : vector<8x128xf32> to vector<8x32xf32>
    %36 = math.tanh %35 : vector<8x32xf32>
    %37 = vector.extract_strided_slice %18 {offsets = [0, 96], sizes = [8, 32], strides = [1, 1]} : vector<8x128xf32> to vector<8x32xf32>
    %cst_23 = arith.constant 5.000000e-01 : f32
    %38 = vector.broadcast %cst_23 : f32 to vector<8x32xf32>
    %39 = arith.mulf %38, %37 : vector<8x32xf32>
    %40 = math.tanh %39 : vector<8x32xf32>
    %cst_24 = arith.constant 5.000000e-01 : f32
    %41 = vector.broadcast %cst_24 : f32 to vector<8x32xf32>
    %42 = arith.mulf %41, %40 : vector<8x32xf32>
    %cst_25 = arith.constant 5.000000e-01 : f32
    %43 = vector.broadcast %cst_25 : f32 to vector<8x32xf32>
    %44 = arith.addf %42, %43 : vector<8x32xf32>
    %45 = arith.mulf %34, %12 : vector<8x32xf32>
    %46 = arith.mulf %26, %36 : vector<8x32xf32>
    %47 = arith.addf %45, %46 : vector<8x32xf32>
    %48 = math.tanh %47 : vector<8x32xf32>
    %49 = arith.mulf %44, %48 : vector<8x32xf32>
    %50 = arith.index_cast %14 : i32 to index
    %c0_26 = arith.constant 0 : index
    %51 = vector.load %arg12[%50, %c0_26] : memref<32x32xf32, #tpu.memory_space<vmem>>, vector<8x32xf32>
    tpu.vector_store %arg12[%50, %c0_26], %49 {strides = array<i32>} : memref<32x32xf32, #tpu.memory_space<vmem>>, vector<8x32xf32>,
    %c1_i32 = arith.constant 1 : i32
    %c8_i32_27 = arith.constant 8 : i32
    %52 = arith.muli %c1_i32, %c8_i32_27 : i32
    %53 = tpu.assume_multiple %52, 8 : i32
    %54 = arith.index_cast %53 : i32 to index
    %c0_28 = arith.constant 0 : index
    %55 = vector.load %arg11[%54, %c0_28] : memref<32x128xf32, #tpu.memory_space<vmem>>, vector<8x128xf32>
    %cst_29 = arith.constant dense<0.000000e+00> : vector<8x128xf32>
    %56 = tpu.matmul %49, %10, %cst_29 {dimension_numbers = #tpu.dot_dimension_numbers<[1], [0], [0], [1], [0, 0, 1, 1], [], []>} : vector<8x32xf32>, vector<32x128xf32>, vector<8x128xf32> -> vector<8x128xf32>
    %57 = arith.addf %55, %56 : vector<8x128xf32>
    %58 = vector.extract_strided_slice %57 {offsets = [0, 0], sizes = [8, 32], strides = [1, 1]} : vector<8x128xf32> to vector<8x32xf32>
    %cst_30 = arith.constant 5.000000e-01 : f32
    %59 = vector.broadcast %cst_30 : f32 to vector<8x32xf32>
    %60 = arith.mulf %59, %58 : vector<8x32xf32>
    %61 = math.tanh %60 : vector<8x32xf32>
    %cst_31 = arith.constant 5.000000e-01 : f32
    %62 = vector.broadcast %cst_31 : f32 to vector<8x32xf32>
    %63 = arith.mulf %62, %61 : vector<8x32xf32>
    %cst_32 = arith.constant 5.000000e-01 : f32
    %64 = vector.broadcast %cst_32 : f32 to vector<8x32xf32>
    %65 = arith.addf %63, %64 : vector<8x32xf32>
    %66 = vector.extract_strided_slice %57 {offsets = [0, 32], sizes = [8, 32], strides = [1, 1]} : vector<8x128xf32> to vector<8x32xf32>
    %cst_33 = arith.constant 5.000000e-01 : f32
    %67 = vector.broadcast %cst_33 : f32 to vector<8x32xf32>
    %68 = arith.mulf %67, %66 : vector<8x32xf32>
    %69 = math.tanh %68 : vector<8x32xf32>
    %cst_34 = arith.constant 5.000000e-01 : f32
    %70 = vector.broadcast %cst_34 : f32 to vector<8x32xf32>
    %71 = arith.mulf %70, %69 : vector<8x32xf32>
    %cst_35 = arith.constant 5.000000e-01 : f32
    %72 = vector.broadcast %cst_35 : f32 to vector<8x32xf32>
    %73 = arith.addf %71, %72 : vector<8x32xf32>
    %74 = vector.extract_strided_slice %57 {offsets = [0, 64], sizes = [8, 32], strides = [1, 1]} : vector<8x128xf32> to vector<8x32xf32>
    %75 = math.tanh %74 : vector<8x32xf32>
    %76 = vector.extract_strided_slice %57 {offsets = [0, 96], sizes = [8, 32], strides = [1, 1]} : vector<8x128xf32> to vector<8x32xf32>
    %cst_36 = arith.constant 5.000000e-01 : f32
    %77 = vector.broadcast %cst_36 : f32 to vector<8x32xf32>
    %78 = arith.mulf %77, %76 : vector<8x32xf32>
    %79 = math.tanh %78 : vector<8x32xf32>
    %cst_37 = arith.constant 5.000000e-01 : f32
    %80 = vector.broadcast %cst_37 : f32 to vector<8x32xf32>
    %81 = arith.mulf %80, %79 : vector<8x32xf32>
    %cst_38 = arith.constant 5.000000e-01 : f32
    %82 = vector.broadcast %cst_38 : f32 to vector<8x32xf32>
    %83 = arith.addf %81, %82 : vector<8x32xf32>
    %84 = arith.mulf %73, %47 : vector<8x32xf32>
    %85 = arith.mulf %65, %75 : vector<8x32xf32>
    %86 = arith.addf %84, %85 : vector<8x32xf32>
    %87 = math.tanh %86 : vector<8x32xf32>
    %88 = arith.mulf %83, %87 : vector<8x32xf32>
    %89 = arith.index_cast %53 : i32 to index
    %c0_39 = arith.constant 0 : index
    %90 = vector.load %arg12[%89, %c0_39] : memref<32x32xf32, #tpu.memory_space<vmem>>, vector<8x32xf32>
    tpu.vector_store %arg12[%89, %c0_39], %88 {strides = array<i32>} : memref<32x32xf32, #tpu.memory_space<vmem>>, vector<8x32xf32>,
    %c2_i32 = arith.constant 2 : i32
    %c8_i32_40 = arith.constant 8 : i32
    %91 = arith.muli %c2_i32, %c8_i32_40 : i32
    %92 = tpu.assume_multiple %91, 8 : i32
    %93 = arith.index_cast %92 : i32 to index
    %c0_41 = arith.constant 0 : index
    %94 = vector.load %arg11[%93, %c0_41] : memref<32x128xf32, #tpu.memory_space<vmem>>, vector<8x128xf32>
    %cst_42 = arith.constant dense<0.000000e+00> : vector<8x128xf32>
    %95 = tpu.matmul %88, %10, %cst_42 {dimension_numbers = #tpu.dot_dimension_numbers<[1], [0], [0], [1], [0, 0, 1, 1], [], []>} : vector<8x32xf32>, vector<32x128xf32>, vector<8x128xf32> -> vector<8x128xf32>
    %96 = arith.addf %94, %95 : vector<8x128xf32>
    %97 = vector.extract_strided_slice %96 {offsets = [0, 0], sizes = [8, 32], strides = [1, 1]} : vector<8x128xf32> to vector<8x32xf32>
    %cst_43 = arith.constant 5.000000e-01 : f32
    %98 = vector.broadcast %cst_43 : f32 to vector<8x32xf32>
    %99 = arith.mulf %98, %97 : vector<8x32xf32>
    %100 = math.tanh %99 : vector<8x32xf32>
    %cst_44 = arith.constant 5.000000e-01 : f32
    %101 = vector.broadcast %cst_44 : f32 to vector<8x32xf32>
    %102 = arith.mulf %101, %100 : vector<8x32xf32>
    %cst_45 = arith.constant 5.000000e-01 : f32
    %103 = vector.broadcast %cst_45 : f32 to vector<8x32xf32>
    %104 = arith.addf %102, %103 : vector<8x32xf32>
    %105 = vector.extract_strided_slice %96 {offsets = [0, 32], sizes = [8, 32], strides = [1, 1]} : vector<8x128xf32> to vector<8x32xf32>
    %cst_46 = arith.constant 5.000000e-01 : f32
    %106 = vector.broadcast %cst_46 : f32 to vector<8x32xf32>
    %107 = arith.mulf %106, %105 : vector<8x32xf32>
    %108 = math.tanh %107 : vector<8x32xf32>
    %cst_47 = arith.constant 5.000000e-01 : f32
    %109 = vector.broadcast %cst_47 : f32 to vector<8x32xf32>
    %110 = arith.mulf %109, %108 : vector<8x32xf32>
    %cst_48 = arith.constant 5.000000e-01 : f32
    %111 = vector.broadcast %cst_48 : f32 to vector<8x32xf32>
    %112 = arith.addf %110, %111 : vector<8x32xf32>
    %113 = vector.extract_strided_slice %96 {offsets = [0, 64], sizes = [8, 32], strides = [1, 1]} : vector<8x128xf32> to vector<8x32xf32>
    %114 = math.tanh %113 : vector<8x32xf32>
    %115 = vector.extract_strided_slice %96 {offsets = [0, 96], sizes = [8, 32], strides = [1, 1]} : vector<8x128xf32> to vector<8x32xf32>
    %cst_49 = arith.constant 5.000000e-01 : f32
    %116 = vector.broadcast %cst_49 : f32 to vector<8x32xf32>
    %117 = arith.mulf %116, %115 : vector<8x32xf32>
    %118 = math.tanh %117 : vector<8x32xf32>
    %cst_50 = arith.constant 5.000000e-01 : f32
    %119 = vector.broadcast %cst_50 : f32 to vector<8x32xf32>
    %120 = arith.mulf %119, %118 : vector<8x32xf32>
    %cst_51 = arith.constant 5.000000e-01 : f32
    %121 = vector.broadcast %cst_51 : f32 to vector<8x32xf32>
    %122 = arith.addf %120, %121 : vector<8x32xf32>
    %123 = arith.mulf %112, %86 : vector<8x32xf32>
    %124 = arith.mulf %104, %114 : vector<8x32xf32>
    %125 = arith.addf %123, %124 : vector<8x32xf32>
    %126 = math.tanh %125 : vector<8x32xf32>
    %127 = arith.mulf %122, %126 : vector<8x32xf32>
    %128 = arith.index_cast %92 : i32 to index
    %c0_52 = arith.constant 0 : index
    %129 = vector.load %arg12[%128, %c0_52] : memref<32x32xf32, #tpu.memory_space<vmem>>, vector<8x32xf32>
    tpu.vector_store %arg12[%128, %c0_52], %127 {strides = array<i32>} : memref<32x32xf32, #tpu.memory_space<vmem>>, vector<8x32xf32>,
    %c3_i32 = arith.constant 3 : i32
    %c8_i32_53 = arith.constant 8 : i32
    %130 = arith.muli %c3_i32, %c8_i32_53 : i32
    %131 = tpu.assume_multiple %130, 8 : i32
    %132 = arith.index_cast %131 : i32 to index
    %c0_54 = arith.constant 0 : index
    %133 = vector.load %arg11[%132, %c0_54] : memref<32x128xf32, #tpu.memory_space<vmem>>, vector<8x128xf32>
    %cst_55 = arith.constant dense<0.000000e+00> : vector<8x128xf32>
    %134 = tpu.matmul %127, %10, %cst_55 {dimension_numbers = #tpu.dot_dimension_numbers<[1], [0], [0], [1], [0, 0, 1, 1], [], []>} : vector<8x32xf32>, vector<32x128xf32>, vector<8x128xf32> -> vector<8x128xf32>
    %135 = arith.addf %133, %134 : vector<8x128xf32>
    %136 = vector.extract_strided_slice %135 {offsets = [0, 0], sizes = [8, 32], strides = [1, 1]} : vector<8x128xf32> to vector<8x32xf32>
    %cst_56 = arith.constant 5.000000e-01 : f32
    %137 = vector.broadcast %cst_56 : f32 to vector<8x32xf32>
    %138 = arith.mulf %137, %136 : vector<8x32xf32>
    %139 = math.tanh %138 : vector<8x32xf32>
    %cst_57 = arith.constant 5.000000e-01 : f32
    %140 = vector.broadcast %cst_57 : f32 to vector<8x32xf32>
    %141 = arith.mulf %140, %139 : vector<8x32xf32>
    %cst_58 = arith.constant 5.000000e-01 : f32
    %142 = vector.broadcast %cst_58 : f32 to vector<8x32xf32>
    %143 = arith.addf %141, %142 : vector<8x32xf32>
    %144 = vector.extract_strided_slice %135 {offsets = [0, 32], sizes = [8, 32], strides = [1, 1]} : vector<8x128xf32> to vector<8x32xf32>
    %cst_59 = arith.constant 5.000000e-01 : f32
    %145 = vector.broadcast %cst_59 : f32 to vector<8x32xf32>
    %146 = arith.mulf %145, %144 : vector<8x32xf32>
    %147 = math.tanh %146 : vector<8x32xf32>
    %cst_60 = arith.constant 5.000000e-01 : f32
    %148 = vector.broadcast %cst_60 : f32 to vector<8x32xf32>
    %149 = arith.mulf %148, %147 : vector<8x32xf32>
    %cst_61 = arith.constant 5.000000e-01 : f32
    %150 = vector.broadcast %cst_61 : f32 to vector<8x32xf32>
    %151 = arith.addf %149, %150 : vector<8x32xf32>
    %152 = vector.extract_strided_slice %135 {offsets = [0, 64], sizes = [8, 32], strides = [1, 1]} : vector<8x128xf32> to vector<8x32xf32>
    %153 = math.tanh %152 : vector<8x32xf32>
    %154 = vector.extract_strided_slice %135 {offsets = [0, 96], sizes = [8, 32], strides = [1, 1]} : vector<8x128xf32> to vector<8x32xf32>
    %cst_62 = arith.constant 5.000000e-01 : f32
    %155 = vector.broadcast %cst_62 : f32 to vector<8x32xf32>
    %156 = arith.mulf %155, %154 : vector<8x32xf32>
    %157 = math.tanh %156 : vector<8x32xf32>
    %cst_63 = arith.constant 5.000000e-01 : f32
    %158 = vector.broadcast %cst_63 : f32 to vector<8x32xf32>
    %159 = arith.mulf %158, %157 : vector<8x32xf32>
    %cst_64 = arith.constant 5.000000e-01 : f32
    %160 = vector.broadcast %cst_64 : f32 to vector<8x32xf32>
    %161 = arith.addf %159, %160 : vector<8x32xf32>
    %162 = arith.mulf %151, %125 : vector<8x32xf32>
    %163 = arith.mulf %143, %153 : vector<8x32xf32>
    %164 = arith.addf %162, %163 : vector<8x32xf32>
    %165 = math.tanh %164 : vector<8x32xf32>
    %166 = arith.mulf %161, %165 : vector<8x32xf32>
    %167 = arith.index_cast %131 : i32 to index
    %c0_65 = arith.constant 0 : index
    %168 = vector.load %arg12[%167, %c0_65] : memref<32x32xf32, #tpu.memory_space<vmem>>, vector<8x32xf32>
    tpu.vector_store %arg12[%167, %c0_65], %166 {strides = array<i32>} : memref<32x32xf32, #tpu.memory_space<vmem>>, vector<8x32xf32>,
    %c4_i32 = arith.constant 4 : i32
    %c0_66 = arith.constant 0 : index
    %c0_67 = arith.constant 0 : index
    %169 = vector.load %arg13[%c0_66, %c0_67] : memref<8x32xf32, #tpu.memory_space<vmem>>, vector<8x32xf32>
    tpu.vector_store %arg13[%c0_66, %c0_67], %166 {strides = array<i32>} : memref<8x32xf32, #tpu.memory_space<vmem>>, vector<8x32xf32>,
    %c0_68 = arith.constant 0 : index
    %c0_69 = arith.constant 0 : index
    %170 = vector.load %arg14[%c0_68, %c0_69] : memref<8x32xf32, #tpu.memory_space<vmem>>, vector<8x32xf32>
    tpu.vector_store %arg14[%c0_68, %c0_69], %164 {strides = array<i32>} : memref<8x32xf32, #tpu.memory_space<vmem>>, vector<8x32xf32>,
    %c0_70 = arith.constant 0 : index
    %c0_71 = arith.constant 0 : index
    %171 = vector.load %arg5[%c0_70, %c0_71] : memref<32x128xf32, #tpu.memory_space<vmem>>, vector<32x128xf32>
    %c0_72 = arith.constant 0 : index
    %c0_73 = arith.constant 0 : index
    %172 = vector.load %arg12[%c0_72, %c0_73] : memref<32x32xf32, #tpu.memory_space<vmem>>, vector<32x32xf32>
    %cst_74 = arith.constant dense<0.000000e+00> : vector<32x128xf32>
    %173 = tpu.matmul %172, %171, %cst_74 {dimension_numbers = #tpu.dot_dimension_numbers<[1], [0], [0], [1], [0, 0, 1, 1], [], []>} : vector<32x32xf32>, vector<32x128xf32>, vector<32x128xf32> -> vector<32x128xf32>
    %c0_75 = arith.constant 0 : index
    %c0_76 = arith.constant 0 : index
    %174 = vector.load %arg7[%c0_75, %c0_76] : memref<1x128xf32, #tpu.memory_space<vmem>>, vector<1x128xf32>
    %175 = vector.broadcast %174 : vector<1x128xf32> to vector<32x128xf32>
    %176 = arith.addf %173, %175 : vector<32x128xf32>
    %c0_77 = arith.constant 0 : index
    %c0_78 = arith.constant 0 : index
    %177 = vector.load %arg11[%c0_77, %c0_78] : memref<32x128xf32, #tpu.memory_space<vmem>>, vector<32x128xf32>
    tpu.vector_store %arg11[%c0_77, %c0_78], %176 {strides = array<i32>} : memref<32x128xf32, #tpu.memory_space<vmem>>, vector<32x128xf32>,
    %c0_79 = arith.constant 0 : index
    %c0_80 = arith.constant 0 : index
    %178 = vector.load %arg6[%c0_79, %c0_80] : memref<32x128xf32, #tpu.memory_space<vmem>>, vector<32x128xf32>
    %c0_81 = arith.constant 0 : index
    %c0_82 = arith.constant 0 : index
    %179 = vector.load %arg15[%c0_81, %c0_82] : memref<8x32xf32, #tpu.memory_space<vmem>>, vector<8x32xf32>
    %c0_83 = arith.constant 0 : index
    %c0_84 = arith.constant 0 : index
    %180 = vector.load %arg16[%c0_83, %c0_84] : memref<8x32xf32, #tpu.memory_space<vmem>>, vector<8x32xf32>
    %c0_i32_85 = arith.constant 0 : i32
    %c8_i32_86 = arith.constant 8 : i32
    %181 = arith.muli %c0_i32_85, %c8_i32_86 : i32
    %182 = tpu.assume_multiple %181, 8 : i32
    %183 = arith.index_cast %182 : i32 to index
    %c0_87 = arith.constant 0 : index
    %184 = vector.load %arg11[%183, %c0_87] : memref<32x128xf32, #tpu.memory_space<vmem>>, vector<8x128xf32>
    %cst_88 = arith.constant dense<0.000000e+00> : vector<8x128xf32>
    %185 = tpu.matmul %179, %178, %cst_88 {dimension_numbers = #tpu.dot_dimension_numbers<[1], [0], [0], [1], [0, 0, 1, 1], [], []>} : vector<8x32xf32>, vector<32x128xf32>, vector<8x128xf32> -> vector<8x128xf32>
    %186 = arith.addf %184, %185 : vector<8x128xf32>
    %187 = vector.extract_strided_slice %186 {offsets = [0, 0], sizes = [8, 32], strides = [1, 1]} : vector<8x128xf32> to vector<8x32xf32>
    %cst_89 = arith.constant 5.000000e-01 : f32
    %188 = vector.broadcast %cst_89 : f32 to vector<8x32xf32>
    %189 = arith.mulf %188, %187 : vector<8x32xf32>
    %190 = math.tanh %189 : vector<8x32xf32>
    %cst_90 = arith.constant 5.000000e-01 : f32
    %191 = vector.broadcast %cst_90 : f32 to vector<8x32xf32>
    %192 = arith.mulf %191, %190 : vector<8x32xf32>
    %cst_91 = arith.constant 5.000000e-01 : f32
    %193 = vector.broadcast %cst_91 : f32 to vector<8x32xf32>
    %194 = arith.addf %192, %193 : vector<8x32xf32>
    %195 = vector.extract_strided_slice %186 {offsets = [0, 32], sizes = [8, 32], strides = [1, 1]} : vector<8x128xf32> to vector<8x32xf32>
    %cst_92 = arith.constant 5.000000e-01 : f32
    %196 = vector.broadcast %cst_92 : f32 to vector<8x32xf32>
    %197 = arith.mulf %196, %195 : vector<8x32xf32>
    %198 = math.tanh %197 : vector<8x32xf32>
    %cst_93 = arith.constant 5.000000e-01 : f32
    %199 = vector.broadcast %cst_93 : f32 to vector<8x32xf32>
    %200 = arith.mulf %199, %198 : vector<8x32xf32>
    %cst_94 = arith.constant 5.000000e-01 : f32
    %201 = vector.broadcast %cst_94 : f32 to vector<8x32xf32>
    %202 = arith.addf %200, %201 : vector<8x32xf32>
    %203 = vector.extract_strided_slice %186 {offsets = [0, 64], sizes = [8, 32], strides = [1, 1]} : vector<8x128xf32> to vector<8x32xf32>
    %204 = math.tanh %203 : vector<8x32xf32>
    %205 = vector.extract_strided_slice %186 {offsets = [0, 96], sizes = [8, 32], strides = [1, 1]} : vector<8x128xf32> to vector<8x32xf32>
    %cst_95 = arith.constant 5.000000e-01 : f32
    %206 = vector.broadcast %cst_95 : f32 to vector<8x32xf32>
    %207 = arith.mulf %206, %205 : vector<8x32xf32>
    %208 = math.tanh %207 : vector<8x32xf32>
    %cst_96 = arith.constant 5.000000e-01 : f32
    %209 = vector.broadcast %cst_96 : f32 to vector<8x32xf32>
    %210 = arith.mulf %209, %208 : vector<8x32xf32>
    %cst_97 = arith.constant 5.000000e-01 : f32
    %211 = vector.broadcast %cst_97 : f32 to vector<8x32xf32>
    %212 = arith.addf %210, %211 : vector<8x32xf32>
    %213 = arith.mulf %202, %180 : vector<8x32xf32>
    %214 = arith.mulf %194, %204 : vector<8x32xf32>
    %215 = arith.addf %213, %214 : vector<8x32xf32>
    %216 = math.tanh %215 : vector<8x32xf32>
    %217 = arith.mulf %212, %216 : vector<8x32xf32>
    %c1_i32_98 = arith.constant 1 : i32
    %c8_i32_99 = arith.constant 8 : i32
    %218 = arith.muli %c1_i32_98, %c8_i32_99 : i32
    %219 = tpu.assume_multiple %218, 8 : i32
    %220 = arith.index_cast %219 : i32 to index
    %c0_100 = arith.constant 0 : index
    %221 = vector.load %arg11[%220, %c0_100] : memref<32x128xf32, #tpu.memory_space<vmem>>, vector<8x128xf32>
    %cst_101 = arith.constant dense<0.000000e+00> : vector<8x128xf32>
    %222 = tpu.matmul %217, %178, %cst_101 {dimension_numbers = #tpu.dot_dimension_numbers<[1], [0], [0], [1], [0, 0, 1, 1], [], []>} : vector<8x32xf32>, vector<32x128xf32>, vector<8x128xf32> -> vector<8x128xf32>
    %223 = arith.addf %221, %222 : vector<8x128xf32>
    %224 = vector.extract_strided_slice %223 {offsets = [0, 0], sizes = [8, 32], strides = [1, 1]} : vector<8x128xf32> to vector<8x32xf32>
    %cst_102 = arith.constant 5.000000e-01 : f32
    %225 = vector.broadcast %cst_102 : f32 to vector<8x32xf32>
    %226 = arith.mulf %225, %224 : vector<8x32xf32>
    %227 = math.tanh %226 : vector<8x32xf32>
    %cst_103 = arith.constant 5.000000e-01 : f32
    %228 = vector.broadcast %cst_103 : f32 to vector<8x32xf32>
    %229 = arith.mulf %228, %227 : vector<8x32xf32>
    %cst_104 = arith.constant 5.000000e-01 : f32
    %230 = vector.broadcast %cst_104 : f32 to vector<8x32xf32>
    %231 = arith.addf %229, %230 : vector<8x32xf32>
    %232 = vector.extract_strided_slice %223 {offsets = [0, 32], sizes = [8, 32], strides = [1, 1]} : vector<8x128xf32> to vector<8x32xf32>
    %cst_105 = arith.constant 5.000000e-01 : f32
    %233 = vector.broadcast %cst_105 : f32 to vector<8x32xf32>
    %234 = arith.mulf %233, %232 : vector<8x32xf32>
    %235 = math.tanh %234 : vector<8x32xf32>
    %cst_106 = arith.constant 5.000000e-01 : f32
    %236 = vector.broadcast %cst_106 : f32 to vector<8x32xf32>
    %237 = arith.mulf %236, %235 : vector<8x32xf32>
    %cst_107 = arith.constant 5.000000e-01 : f32
    %238 = vector.broadcast %cst_107 : f32 to vector<8x32xf32>
    %239 = arith.addf %237, %238 : vector<8x32xf32>
    %240 = vector.extract_strided_slice %223 {offsets = [0, 64], sizes = [8, 32], strides = [1, 1]} : vector<8x128xf32> to vector<8x32xf32>
    %241 = math.tanh %240 : vector<8x32xf32>
    %242 = vector.extract_strided_slice %223 {offsets = [0, 96], sizes = [8, 32], strides = [1, 1]} : vector<8x128xf32> to vector<8x32xf32>
    %cst_108 = arith.constant 5.000000e-01 : f32
    %243 = vector.broadcast %cst_108 : f32 to vector<8x32xf32>
    %244 = arith.mulf %243, %242 : vector<8x32xf32>
    %245 = math.tanh %244 : vector<8x32xf32>
    %cst_109 = arith.constant 5.000000e-01 : f32
    %246 = vector.broadcast %cst_109 : f32 to vector<8x32xf32>
    %247 = arith.mulf %246, %245 : vector<8x32xf32>
    %cst_110 = arith.constant 5.000000e-01 : f32
    %248 = vector.broadcast %cst_110 : f32 to vector<8x32xf32>
    %249 = arith.addf %247, %248 : vector<8x32xf32>
    %250 = arith.mulf %239, %215 : vector<8x32xf32>
    %251 = arith.mulf %231, %241 : vector<8x32xf32>
    %252 = arith.addf %250, %251 : vector<8x32xf32>
    %253 = math.tanh %252 : vector<8x32xf32>
    %254 = arith.mulf %249, %253 : vector<8x32xf32>
    %c2_i32_111 = arith.constant 2 : i32
    %c8_i32_112 = arith.constant 8 : i32
    %255 = arith.muli %c2_i32_111, %c8_i32_112 : i32
    %256 = tpu.assume_multiple %255, 8 : i32
    %257 = arith.index_cast %256 : i32 to index
    %c0_113 = arith.constant 0 : index
    %258 = vector.load %arg11[%257, %c0_113] : memref<32x128xf32, #tpu.memory_space<vmem>>, vector<8x128xf32>
    %cst_114 = arith.constant dense<0.000000e+00> : vector<8x128xf32>
    %259 = tpu.matmul %254, %178, %cst_114 {dimension_numbers = #tpu.dot_dimension_numbers<[1], [0], [0], [1], [0, 0, 1, 1], [], []>} : vector<8x32xf32>, vector<32x128xf32>, vector<8x128xf32> -> vector<8x128xf32>
    %260 = arith.addf %258, %259 : vector<8x128xf32>
    %261 = vector.extract_strided_slice %260 {offsets = [0, 0], sizes = [8, 32], strides = [1, 1]} : vector<8x128xf32> to vector<8x32xf32>
    %cst_115 = arith.constant 5.000000e-01 : f32
    %262 = vector.broadcast %cst_115 : f32 to vector<8x32xf32>
    %263 = arith.mulf %262, %261 : vector<8x32xf32>
    %264 = math.tanh %263 : vector<8x32xf32>
    %cst_116 = arith.constant 5.000000e-01 : f32
    %265 = vector.broadcast %cst_116 : f32 to vector<8x32xf32>
    %266 = arith.mulf %265, %264 : vector<8x32xf32>
    %cst_117 = arith.constant 5.000000e-01 : f32
    %267 = vector.broadcast %cst_117 : f32 to vector<8x32xf32>
    %268 = arith.addf %266, %267 : vector<8x32xf32>
    %269 = vector.extract_strided_slice %260 {offsets = [0, 32], sizes = [8, 32], strides = [1, 1]} : vector<8x128xf32> to vector<8x32xf32>
    %cst_118 = arith.constant 5.000000e-01 : f32
    %270 = vector.broadcast %cst_118 : f32 to vector<8x32xf32>
    %271 = arith.mulf %270, %269 : vector<8x32xf32>
    %272 = math.tanh %271 : vector<8x32xf32>
    %cst_119 = arith.constant 5.000000e-01 : f32
    %273 = vector.broadcast %cst_119 : f32 to vector<8x32xf32>
    %274 = arith.mulf %273, %272 : vector<8x32xf32>
    %cst_120 = arith.constant 5.000000e-01 : f32
    %275 = vector.broadcast %cst_120 : f32 to vector<8x32xf32>
    %276 = arith.addf %274, %275 : vector<8x32xf32>
    %277 = vector.extract_strided_slice %260 {offsets = [0, 64], sizes = [8, 32], strides = [1, 1]} : vector<8x128xf32> to vector<8x32xf32>
    %278 = math.tanh %277 : vector<8x32xf32>
    %279 = vector.extract_strided_slice %260 {offsets = [0, 96], sizes = [8, 32], strides = [1, 1]} : vector<8x128xf32> to vector<8x32xf32>
    %cst_121 = arith.constant 5.000000e-01 : f32
    %280 = vector.broadcast %cst_121 : f32 to vector<8x32xf32>
    %281 = arith.mulf %280, %279 : vector<8x32xf32>
    %282 = math.tanh %281 : vector<8x32xf32>
    %cst_122 = arith.constant 5.000000e-01 : f32
    %283 = vector.broadcast %cst_122 : f32 to vector<8x32xf32>
    %284 = arith.mulf %283, %282 : vector<8x32xf32>
    %cst_123 = arith.constant 5.000000e-01 : f32
    %285 = vector.broadcast %cst_123 : f32 to vector<8x32xf32>
    %286 = arith.addf %284, %285 : vector<8x32xf32>
    %287 = arith.mulf %276, %252 : vector<8x32xf32>
    %288 = arith.mulf %268, %278 : vector<8x32xf32>
    %289 = arith.addf %287, %288 : vector<8x32xf32>
    %290 = math.tanh %289 : vector<8x32xf32>
    %291 = arith.mulf %286, %290 : vector<8x32xf32>
    %c3_i32_124 = arith.constant 3 : i32
    %c8_i32_125 = arith.constant 8 : i32
    %292 = arith.muli %c3_i32_124, %c8_i32_125 : i32
    %293 = tpu.assume_multiple %292, 8 : i32
    %294 = arith.index_cast %293 : i32 to index
    %c0_126 = arith.constant 0 : index
    %295 = vector.load %arg11[%294, %c0_126] : memref<32x128xf32, #tpu.memory_space<vmem>>, vector<8x128xf32>
    %cst_127 = arith.constant dense<0.000000e+00> : vector<8x128xf32>
    %296 = tpu.matmul %291, %178, %cst_127 {dimension_numbers = #tpu.dot_dimension_numbers<[1], [0], [0], [1], [0, 0, 1, 1], [], []>} : vector<8x32xf32>, vector<32x128xf32>, vector<8x128xf32> -> vector<8x128xf32>
    %297 = arith.addf %295, %296 : vector<8x128xf32>
    %298 = vector.extract_strided_slice %297 {offsets = [0, 0], sizes = [8, 32], strides = [1, 1]} : vector<8x128xf32> to vector<8x32xf32>
    %cst_128 = arith.constant 5.000000e-01 : f32
    %299 = vector.broadcast %cst_128 : f32 to vector<8x32xf32>
    %300 = arith.mulf %299, %298 : vector<8x32xf32>
    %301 = math.tanh %300 : vector<8x32xf32>
    %cst_129 = arith.constant 5.000000e-01 : f32
    %302 = vector.broadcast %cst_129 : f32 to vector<8x32xf32>
    %303 = arith.mulf %302, %301 : vector<8x32xf32>
    %cst_130 = arith.constant 5.000000e-01 : f32
    %304 = vector.broadcast %cst_130 : f32 to vector<8x32xf32>
    %305 = arith.addf %303, %304 : vector<8x32xf32>
    %306 = vector.extract_strided_slice %297 {offsets = [0, 32], sizes = [8, 32], strides = [1, 1]} : vector<8x128xf32> to vector<8x32xf32>
    %cst_131 = arith.constant 5.000000e-01 : f32
    %307 = vector.broadcast %cst_131 : f32 to vector<8x32xf32>
    %308 = arith.mulf %307, %306 : vector<8x32xf32>
    %309 = math.tanh %308 : vector<8x32xf32>
    %cst_132 = arith.constant 5.000000e-01 : f32
    %310 = vector.broadcast %cst_132 : f32 to vector<8x32xf32>
    %311 = arith.mulf %310, %309 : vector<8x32xf32>
    %cst_133 = arith.constant 5.000000e-01 : f32
    %312 = vector.broadcast %cst_133 : f32 to vector<8x32xf32>
    %313 = arith.addf %311, %312 : vector<8x32xf32>
    %314 = vector.extract_strided_slice %297 {offsets = [0, 64], sizes = [8, 32], strides = [1, 1]} : vector<8x128xf32> to vector<8x32xf32>
    %315 = math.tanh %314 : vector<8x32xf32>
    %316 = vector.extract_strided_slice %297 {offsets = [0, 96], sizes = [8, 32], strides = [1, 1]} : vector<8x128xf32> to vector<8x32xf32>
    %cst_134 = arith.constant 5.000000e-01 : f32
    %317 = vector.broadcast %cst_134 : f32 to vector<8x32xf32>
    %318 = arith.mulf %317, %316 : vector<8x32xf32>
    %319 = math.tanh %318 : vector<8x32xf32>
    %cst_135 = arith.constant 5.000000e-01 : f32
    %320 = vector.broadcast %cst_135 : f32 to vector<8x32xf32>
    %321 = arith.mulf %320, %319 : vector<8x32xf32>
    %cst_136 = arith.constant 5.000000e-01 : f32
    %322 = vector.broadcast %cst_136 : f32 to vector<8x32xf32>
    %323 = arith.addf %321, %322 : vector<8x32xf32>
    %324 = arith.mulf %313, %289 : vector<8x32xf32>
    %325 = arith.mulf %305, %315 : vector<8x32xf32>
    %326 = arith.addf %324, %325 : vector<8x32xf32>
    %327 = math.tanh %326 : vector<8x32xf32>
    %328 = arith.mulf %323, %327 : vector<8x32xf32>
    %c4_i32_137 = arith.constant 4 : i32
    %c0_138 = arith.constant 0 : index
    %c0_139 = arith.constant 0 : index
    %329 = vector.load %arg15[%c0_138, %c0_139] : memref<8x32xf32, #tpu.memory_space<vmem>>, vector<8x32xf32>
    tpu.vector_store %arg15[%c0_138, %c0_139], %328 {strides = array<i32>} : memref<8x32xf32, #tpu.memory_space<vmem>>, vector<8x32xf32>,
    %c0_140 = arith.constant 0 : index
    %c0_141 = arith.constant 0 : index
    %330 = vector.load %arg16[%c0_140, %c0_141] : memref<8x32xf32, #tpu.memory_space<vmem>>, vector<8x32xf32>
    tpu.vector_store %arg16[%c0_140, %c0_141], %326 {strides = array<i32>} : memref<8x32xf32, #tpu.memory_space<vmem>>, vector<8x32xf32>,
    %c0_142 = arith.constant 0 : index
    %c0_143 = arith.constant 0 : index
    %331 = vector.load %arg8[%c0_142, %c0_143] : memref<32x128xf32, #tpu.memory_space<vmem>>, vector<32x128xf32>
    %cst_144 = arith.constant dense<0.000000e+00> : vector<8x128xf32>
    %332 = tpu.matmul %328, %331, %cst_144 {dimension_numbers = #tpu.dot_dimension_numbers<[1], [0], [0], [1], [0, 0, 1, 1], [], []>} : vector<8x32xf32>, vector<32x128xf32>, vector<8x128xf32> -> vector<8x128xf32>
    %c0_145 = arith.constant 0 : index
    %c0_146 = arith.constant 0 : index
    %333 = vector.load %arg9[%c0_145, %c0_146] : memref<1x128xf32, #tpu.memory_space<vmem>>, vector<1x128xf32>
    %334 = vector.broadcast %333 : vector<1x128xf32> to vector<8x128xf32>
    %335 = arith.addf %332, %334 : vector<8x128xf32>
    %c0_147 = arith.constant 0 : index
    %c0_148 = arith.constant 0 : index
    %336 = vector.load %arg10[%c0_147, %c0_148] : memref<8x128xf32, #tpu.memory_space<vmem>>, vector<8x128xf32>
    tpu.vector_store %arg10[%c0_147, %c0_148], %335 {strides = array<i32>} : memref<8x128xf32, #tpu.memory_space<vmem>>, vector<8x128xf32>,
    return
  }
  func.func @transform_0(%arg0: i32) -> (i32, i32) {
    %c0_i32 = arith.constant 0 : i32
    %c0_i32_0 = arith.constant 0 : i32
    return %arg0, %c0_i32 : i32, i32
  }
  func.func @transform_1(%arg0: i32) -> (i32, i32) {
    %c0_i32 = arith.constant 0 : i32
    %c0_i32_0 = arith.constant 0 : i32
    %c0_i32_1 = arith.constant 0 : i32
    return %c0_i32, %c0_i32_0 : i32, i32
  }
  func.func @transform_2(%arg0: i32) -> (i32, i32) {
    %c0_i32 = arith.constant 0 : i32
    %c0_i32_0 = arith.constant 0 : i32
    %c0_i32_1 = arith.constant 0 : i32
    return %c0_i32, %c0_i32_0 : i32, i32
  }
  func.func @transform_3(%arg0: i32) -> (i32, i32) {
    %c0_i32 = arith.constant 0 : i32
    %c0_i32_0 = arith.constant 0 : i32
    %c0_i32_1 = arith.constant 0 : i32
    return %c0_i32, %c0_i32_0 : i32, i32
  }
  func.func @transform_4(%arg0: i32) -> (i32, i32) {
    %c0_i32 = arith.constant 0 : i32
    %c0_i32_0 = arith.constant 0 : i32
    %c0_i32_1 = arith.constant 0 : i32
    return %c0_i32, %c0_i32_0 : i32, i32
  }
  func.func @transform_5(%arg0: i32) -> (i32, i32) {
    %c0_i32 = arith.constant 0 : i32
    %c0_i32_0 = arith.constant 0 : i32
    %c0_i32_1 = arith.constant 0 : i32
    return %c0_i32, %c0_i32_0 : i32, i32
  }
  func.func @transform_6(%arg0: i32) -> (i32, i32) {
    %c0_i32 = arith.constant 0 : i32
    %c0_i32_0 = arith.constant 0 : i32
    %c0_i32_1 = arith.constant 0 : i32
    return %c0_i32, %c0_i32_0 : i32, i32
  }
  func.func @transform_7(%arg0: i32) -> (i32, i32) {
    %c0_i32 = arith.constant 0 : i32
    %c0_i32_0 = arith.constant 0 : i32
    %c0_i32_1 = arith.constant 0 : i32
    return %c0_i32, %c0_i32_0 : i32, i32
  }
  func.func @transform_8(%arg0: i32) -> (i32, i32) {
    %c0_i32 = arith.constant 0 : i32
    %c0_i32_0 = arith.constant 0 : i32
    %c0_i32_1 = arith.constant 0 : i32
    return %c0_i32, %c0_i32_0 : i32, i32
  }
  func.func @transform_9(%arg0: i32) -> (i32, i32) {
    %c0_i32 = arith.constant 0 : i32
    %c0_i32_0 = arith.constant 0 : i32
    %c0_i32_1 = arith.constant 0 : i32
    return %c0_i32, %c0_i32_0 : i32, i32
  }
}

</mosaic_0001>

<llo_original>
// kernel: lstm_forward.1
$region0: #{lstm_forward.1}
  #allocation0 [shape = 'u32[]', space=smem, size = 0x4, offset = 0x4, fixed_abs, tag = 'smem constant byte address 0x4 - core index']
  #allocation1 [shape = 'u32[144,128]{1,0:T(1,128)}', space=vmem, size = 0x12000, scoped, tag = 'internal scratch']
  #allocation2 [shape = 'f32[32,128]{1,0:T(8,128)}', space=vmem, size = 0x4000, scoped, tag = 'scratch operand']
  #allocation3 [shape = 'f32[32,32]{1,0:T(8,128)}', space=vmem, size = 0x4000, scoped, tag = 'scratch operand']
  #allocation4 [shape = 'f32[8,32]{1,0:T(8,128)}', space=vmem, size = 0x1000, scoped, tag = 'scratch operand']
  #allocation5 [shape = 'f32[8,32]{1,0:T(8,128)}', space=vmem, size = 0x1000, scoped, tag = 'scratch operand']
  #allocation6 [shape = 'f32[8,32]{1,0:T(8,128)}', space=vmem, size = 0x1000, scoped, tag = 'scratch operand']
  #allocation7 [shape = 'f32[8,32]{1,0:T(8,128)}', space=vmem, size = 0x1000, scoped, tag = 'scratch operand']
  %s0 = inlined_call_operand.vmem [shape: f32[64,16], index: 0, kind: input, shape index: {}]
  %s1 = inlined_call_operand.vmem [shape: f32[16,128], index: 1, kind: input, shape index: {}]
  %s2 = inlined_call_operand.vmem [shape: f32[32,128], index: 2, kind: input, shape index: {}]
  %s3 = inlined_call_operand.vmem [shape: f32[1,128], index: 3, kind: input, shape index: {}]
  %s4 = inlined_call_operand.vmem [shape: f32[32,128], index: 4, kind: input, shape index: {}]
  %s5 = inlined_call_operand.vmem [shape: f32[32,128], index: 5, kind: input, shape index: {}]
  %s6 = inlined_call_operand.vmem [shape: f32[1,128], index: 6, kind: input, shape index: {}]
  %s7 = inlined_call_operand.vmem [shape: f32[32,128], index: 7, kind: input, shape index: {}]
  %s8 = inlined_call_operand.vmem [shape: f32[1,128], index: 8, kind: input, shape index: {}]
  %s9 = inlined_call_operand.vmem [shape: f32[8,128], index: 9, kind: output, shape index: {}]
  %s10 = sld [smem:[#allocation0]]
  $region73: #{lstm_forward.1} parent=0
    _
  %s12 = ssub.s32 1, %s10
  %s13 = scalar_select 0, %s12, %s10
  loop: start=0, step=1, limit=4
  $region2: #{lstm_forward.1} parent=0 // loop_pre_header
    _
  $region3: #{lstm_forward.1} parent=0 // loop_header
    %s15 = sphi 0, %s19
    %p16 = scmp.ge.s32.totalorder %s15, 4
    %s25 = sphi 0, %s27
    %s28 = sphi 0, %s25
    %s29 = sphi 0, %s28
    %s45 = sphi 0, %s29
    %s49 = sphi 0, %s49
    %s51 = sphi 0, %s49
    %s52 = sphi 0, %s51
    %s66 = sphi 0, %s52
    %s70 = sphi 0, %s70
    %s72 = sphi 0, %s70
    %s73 = sphi 0, %s72
    %s87 = sphi 0, %s73
    %s91 = sphi 0, %s91
    %s93 = sphi 0, %s91
    %s94 = sphi 0, %s93
    %s108 = sphi 0, %s94
    %s112 = sphi 0, %s112
    %s114 = sphi 0, %s112
    %s115 = sphi 0, %s114
    %s129 = sphi 0, %s115
    %s133 = sphi 0, %s133
    %s135 = sphi 0, %s133
    %s136 = sphi 0, %s135
    %s150 = sphi 0, %s136
    %s154 = sphi 0, %s154
    %s156 = sphi 0, %s154
    %s157 = sphi 0, %s156
    %s171 = sphi 0, %s157
    %s175 = sphi 0, %s175
    %s177 = sphi 0, %s175
    %s178 = sphi 0, %s177
    %s192 = sphi 0, %s178
    %s196 = sphi 0, %s196
    %s198 = sphi 0, %s196
    %s199 = sphi 0, %s198
    %s213 = sphi 0, %s199
    %s217 = sphi 0, %s217
    %s219 = sphi 0, %s217
    %s220 = sphi 0, %s219
    %s234 = sphi 0, %s220
  $region4: #{lstm_forward.1} parent=0 // loop_header_branch
    %18 = sbr.rel (%p16) target = $region8
  $region5: #{lstm_forward.1} parent=0 // loop_body
    %s20 = ssub.s32 %s15, 1
    %s21 = ssub.s32 %s15, 2
    %s22 = sadd.s32 %s15, 1
    %s23 = ssub.s32 %s15, %s22
    %p24 = scmp.eq.s32.totalorder %s23, 0
    %s26 = sadd.s32 %s25, 1
    %s27 = scalar_select %p24, %s25, %s26
    %p30 = pneg %p24
    %p31 = scmp.eq.s32.totalorder %s15, 1
    %p32 = por %p30, %p31
    %p33 = scmp.ne.s32.totalorder %s25, %s28
    %p34 = scmp.eq.s32.totalorder %s15, 0
    %p35 = por %p33, %p34
    %p36 = scmp.ne.s32.totalorder %s25, %s28
    %p37 = scmp.eq.s32.totalorder %s20, 1
    %p38 = por %p36, %p37
    %p39 = scmp.ne.s32.totalorder %s28, %s29
    %p40 = scmp.eq.s32.totalorder %s20, 0
    %p41 = por %p39, %p40
    %p42 = scmp.ne.s32.totalorder %s28, %s29
    %p43 = scmp.eq.s32.totalorder %s21, 1
    %p44 = por %p42, %p43
    %p46 = scmp.ne.s32.totalorder %s29, %s45
    %p47 = scmp.eq.s32.totalorder %s21, 0
    %p48 = por %p46, %p47
    %s50 = sadd.s32 %s49, 1
    %p53 = scmp.eq.s32.totalorder %s15, 1
    %p54 = scmp.ne.s32.totalorder %s49, %s51
    %p55 = scmp.eq.s32.totalorder %s15, 0
    %p56 = por %p54, %p55
    %p57 = scmp.ne.s32.totalorder %s49, %s51
    %p58 = scmp.eq.s32.totalorder %s20, 1
    %p59 = por %p57, %p58
    %p60 = scmp.ne.s32.totalorder %s51, %s52
    %p61 = scmp.eq.s32.totalorder %s20, 0
    %p62 = por %p60, %p61
    %p63 = scmp.ne.s32.totalorder %s51, %s52
    %p64 = scmp.eq.s32.totalorder %s21, 1
    %p65 = por %p63, %p64
    %p67 = scmp.ne.s32.totalorder %s52, %s66
    %p68 = scmp.eq.s32.totalorder %s21, 0
    %p69 = por %p67, %p68
    %s71 = sadd.s32 %s70, 1
    %p74 = scmp.eq.s32.totalorder %s15, 1
    %p75 = scmp.ne.s32.totalorder %s70, %s72
    %p76 = scmp.eq.s32.totalorder %s15, 0
    %p77 = por %p75, %p76
    %p78 = scmp.ne.s32.totalorder %s70, %s72
    %p79 = scmp.eq.s32.totalorder %s20, 1
    %p80 = por %p78, %p79
    %p81 = scmp.ne.s32.totalorder %s72, %s73
    %p82 = scmp.eq.s32.totalorder %s20, 0
    %p83 = por %p81, %p82
    %p84 = scmp.ne.s32.totalorder %s72, %s73
    %p85 = scmp.eq.s32.totalorder %s21, 1
    %p86 = por %p84, %p85
    %p88 = scmp.ne.s32.totalorder %s73, %s87
    %p89 = scmp.eq.s32.totalorder %s21, 0
    %p90 = por %p88, %p89
    %s92 = sadd.s32 %s91, 1
    %p95 = scmp.eq.s32.totalorder %s15, 1
    %p96 = scmp.ne.s32.totalorder %s91, %s93
    %p97 = scmp.eq.s32.totalorder %s15, 0
    %p98 = por %p96, %p97
    %p99 = scmp.ne.s32.totalorder %s91, %s93
    %p100 = scmp.eq.s32.totalorder %s20, 1
    %p101 = por %p99, %p100
    %p102 = scmp.ne.s32.totalorder %s93, %s94
    %p103 = scmp.eq.s32.totalorder %s20, 0
    %p104 = por %p102, %p103
    %p105 = scmp.ne.s32.totalorder %s93, %s94
    %p106 = scmp.eq.s32.totalorder %s21, 1
    %p107 = por %p105, %p106
    %p109 = scmp.ne.s32.totalorder %s94, %s108
    %p110 = scmp.eq.s32.totalorder %s21, 0
    %p111 = por %p109, %p110
    %s113 = sadd.s32 %s112, 1
    %p116 = scmp.eq.s32.totalorder %s15, 1
    %p117 = scmp.ne.s32.totalorder %s112, %s114
    %p118 = scmp.eq.s32.totalorder %s15, 0
    %p119 = por %p117, %p118
    %p120 = scmp.ne.s32.totalorder %s112, %s114
    %p121 = scmp.eq.s32.totalorder %s20, 1
    %p122 = por %p120, %p121
    %p123 = scmp.ne.s32.totalorder %s114, %s115
    %p124 = scmp.eq.s32.totalorder %s20, 0
    %p125 = por %p123, %p124
    %p126 = scmp.ne.s32.totalorder %s114, %s115
    %p127 = scmp.eq.s32.totalorder %s21, 1
    %p128 = por %p126, %p127
    %p130 = scmp.ne.s32.totalorder %s115, %s129
    %p131 = scmp.eq.s32.totalorder %s21, 0
    %p132 = por %p130, %p131
    %s134 = sadd.s32 %s133, 1
    %p137 = scmp.eq.s32.totalorder %s15, 1
    %p138 = scmp.ne.s32.totalorder %s133, %s135
    %p139 = scmp.eq.s32.totalorder %s15, 0
    %p140 = por %p138, %p139
    %p141 = scmp.ne.s32.totalorder %s133, %s135
    %p142 = scmp.eq.s32.totalorder %s20, 1
    %p143 = por %p141, %p142
    %p144 = scmp.ne.s32.totalorder %s135, %s136
    %p145 = scmp.eq.s32.totalorder %s20, 0
    %p146 = por %p144, %p145
    %p147 = scmp.ne.s32.totalorder %s135, %s136
    %p148 = scmp.eq.s32.totalorder %s21, 1
    %p149 = por %p147, %p148
    %p151 = scmp.ne.s32.totalorder %s136, %s150
    %p152 = scmp.eq.s32.totalorder %s21, 0
    %p153 = por %p151, %p152
    %s155 = sadd.s32 %s154, 1
    %p158 = scmp.eq.s32.totalorder %s15, 1
    %p159 = scmp.ne.s32.totalorder %s154, %s156
    %p160 = scmp.eq.s32.totalorder %s15, 0
    %p161 = por %p159, %p160
    %p162 = scmp.ne.s32.totalorder %s154, %s156
    %p163 = scmp.eq.s32.totalorder %s20, 1
    %p164 = por %p162, %p163
    %p165 = scmp.ne.s32.totalorder %s156, %s157
    %p166 = scmp.eq.s32.totalorder %s20, 0
    %p167 = por %p165, %p166
    %p168 = scmp.ne.s32.totalorder %s156, %s157
    %p169 = scmp.eq.s32.totalorder %s21, 1
    %p170 = por %p168, %p169
    %p172 = scmp.ne.s32.totalorder %s157, %s171
    %p173 = scmp.eq.s32.totalorder %s21, 0
    %p174 = por %p172, %p173
    %s176 = sadd.s32 %s175, 1
    %p179 = scmp.eq.s32.totalorder %s15, 1
    %p180 = scmp.ne.s32.totalorder %s175, %s177
    %p181 = scmp.eq.s32.totalorder %s15, 0
    %p182 = por %p180, %p181
    %p183 = scmp.ne.s32.totalorder %s175, %s177
    %p184 = scmp.eq.s32.totalorder %s20, 1
    %p185 = por %p183, %p184
    %p186 = scmp.ne.s32.totalorder %s177, %s178
    %p187 = scmp.eq.s32.totalorder %s20, 0
    %p188 = por %p186, %p187
    %p189 = scmp.ne.s32.totalorder %s177, %s178
    %p190 = scmp.eq.s32.totalorder %s21, 1
    %p191 = por %p189, %p190
    %p193 = scmp.ne.s32.totalorder %s178, %s192
    %p194 = scmp.eq.s32.totalorder %s21, 0
    %p195 = por %p193, %p194
    %s197 = sadd.s32 %s196, 1
    %p200 = scmp.eq.s32.totalorder %s15, 1
    %p201 = scmp.ne.s32.totalorder %s196, %s198
    %p202 = scmp.eq.s32.totalorder %s15, 0
    %p203 = por %p201, %p202
    %p204 = scmp.ne.s32.totalorder %s196, %s198
    %p205 = scmp.eq.s32.totalorder %s20, 1
    %p206 = por %p204, %p205
    %p207 = scmp.ne.s32.totalorder %s198, %s199
    %p208 = scmp.eq.s32.totalorder %s20, 0
    %p209 = por %p207, %p208
    %p210 = scmp.ne.s32.totalorder %s198, %s199
    %p211 = scmp.eq.s32.totalorder %s21, 1
    %p212 = por %p210, %p211
    %p214 = scmp.ne.s32.totalorder %s199, %s213
    %p215 = scmp.eq.s32.totalorder %s21, 0
    %p216 = por %p214, %p215
    %s218 = sadd.s32 %s217, 1
    %p221 = scmp.eq.s32.totalorder %s15, 1
    %p222 = scmp.ne.s32.totalorder %s217, %s219
    %p223 = scmp.eq.s32.totalorder %s15, 0
    %p224 = por %p222, %p223
    %p225 = scmp.ne.s32.totalorder %s217, %s219
    %p226 = scmp.eq.s32.totalorder %s20, 1
    %p227 = por %p225, %p226
    %p228 = scmp.ne.s32.totalorder %s219, %s220
    %p229 = scmp.eq.s32.totalorder %s20, 0
    %p230 = por %p228, %p229
    %p231 = scmp.ne.s32.totalorder %s219, %s220
    %p232 = scmp.eq.s32.totalorder %s21, 1
    %p233 = por %p231, %p232
    %p235 = scmp.ne.s32.totalorder %s220, %s234
    %p236 = scmp.eq.s32.totalorder %s21, 0
    %p237 = por %p235, %p236
    %p238 = scmp.le.s32.totalorder 1, %s15
    %p239 = scmp.lt.s32.totalorder %s15, 3
    %p240 = pnand %p238, %p239
    %p241 = pneg %p240
    // Predicated region
    $region9: #{lstm_forward.1} parent=5 // pred_check
      _
    $region10: #{lstm_forward.1} parent=5 // pred_check_branch
      %243 = sbr.rel (%p240) target = $region12
    $region11: #{lstm_forward.1} parent=5 // pred_region
      %s244 = ssub.s32 %s15, 1
      // Predicated region
      $region13: #{lstm_forward.1} parent=11 // pred_check
        %p245 = pneg %p62
      $region14: #{lstm_forward.1} parent=11 // pred_check_branch
        %247 = sbr.rel (%p245) target = $region16
      $region15: #{lstm_forward.1} parent=11 // pred_region
        _
      $region16: #{lstm_forward.1} parent=11 // pred_fallthru
        _
      // Predicated region
      $region17: #{lstm_forward.1} parent=11 // pred_check
        %p248 = pneg %p83
      $region18: #{lstm_forward.1} parent=11 // pred_check_branch
        %250 = sbr.rel (%p248) target = $region20
      $region19: #{lstm_forward.1} parent=11 // pred_region
        _
      $region20: #{lstm_forward.1} parent=11 // pred_fallthru
        _
      // Predicated region
      $region21: #{lstm_forward.1} parent=11 // pred_check
        %p251 = pneg %p104
      $region22: #{lstm_forward.1} parent=11 // pred_check_branch
        %253 = sbr.rel (%p251) target = $region24
      $region23: #{lstm_forward.1} parent=11 // pred_region
        _
      $region24: #{lstm_forward.1} parent=11 // pred_fallthru
        _
      // Predicated region
      $region25: #{lstm_forward.1} parent=11 // pred_check
        %p254 = pneg %p125
      $region26: #{lstm_forward.1} parent=11 // pred_check_branch
        %256 = sbr.rel (%p254) target = $region28
      $region27: #{lstm_forward.1} parent=11 // pred_region
        _
      $region28: #{lstm_forward.1} parent=11 // pred_fallthru
        _
      // Predicated region
      $region29: #{lstm_forward.1} parent=11 // pred_check
        %p257 = pneg %p146
      $region30: #{lstm_forward.1} parent=11 // pred_check_branch
        %259 = sbr.rel (%p257) target = $region32
      $region31: #{lstm_forward.1} parent=11 // pred_region
        _
      $region32: #{lstm_forward.1} parent=11 // pred_fallthru
        _
      // Predicated region
      $region33: #{lstm_forward.1} parent=11 // pred_check
        %p260 = pneg %p167
      $region34: #{lstm_forward.1} parent=11 // pred_check_branch
        %262 = sbr.rel (%p260) target = $region36
      $region35: #{lstm_forward.1} parent=11 // pred_region
        _
      $region36: #{lstm_forward.1} parent=11 // pred_fallthru
        _
      // Predicated region
      $region37: #{lstm_forward.1} parent=11 // pred_check
        %p263 = pneg %p188
      $region38: #{lstm_forward.1} parent=11 // pred_check_branch
        %265 = sbr.rel (%p263) target = $region40
      $region39: #{lstm_forward.1} parent=11 // pred_region
        _
      $region40: #{lstm_forward.1} parent=11 // pred_fallthru
        _
      // Predicated region
      $region41: #{lstm_forward.1} parent=11 // pred_check
        %p266 = pneg %p209
      $region42: #{lstm_forward.1} parent=11 // pred_check_branch
        %268 = sbr.rel (%p266) target = $region44
      $region43: #{lstm_forward.1} parent=11 // pred_region
        _
      $region44: #{lstm_forward.1} parent=11 // pred_fallthru
        _
    $region12: #{lstm_forward.1} parent=5 // pred_fallthru
      _
    %p269 = scmp.lt.s32.totalorder %s15, 2
    // Predicated region
    $region45: #{lstm_forward.1} parent=5 // pred_check
      %p270 = pneg %p269
    $region46: #{lstm_forward.1} parent=5 // pred_check_branch
      %272 = sbr.rel (%p270) target = $region48
    $region47: #{lstm_forward.1} parent=5 // pred_region
      // Predicated region
      $region49: #{lstm_forward.1} parent=47 // pred_check
        %p273 = pneg %p35
      $region50: #{lstm_forward.1} parent=47 // pred_check_branch
        %275 = sbr.rel (%p273) target = $region52
      $region51: #{lstm_forward.1} parent=47 // pred_region
        %s276 = smul.u32 4, %s15
        %p277 = scmp.lt.s32.totalorder %s276, 7
        %s278 = scalar_select %p277, %s276, 7
        %s279 = smul.addr %s278, 8
        %s280 = scalar_lea.vmem %s0, %s279
        %s281 = smul.u32 4, %s15
      $region52: #{lstm_forward.1} parent=47 // pred_fallthru
        _
    $region48: #{lstm_forward.1} parent=5 // pred_fallthru
      _
    %p282 = scmp.le.s32.totalorder 1, %s15
    %p283 = scmp.lt.s32.totalorder %s15, 3
    %p284 = pnand %p282, %p283
    %p285 = pneg %p284
    // Predicated region
    $region53: #{lstm_forward.1} parent=5 // pred_check
      _
    $region54: #{lstm_forward.1} parent=5 // pred_check_branch
      %287 = sbr.rel (%p284) target = $region56
    $region55: #{lstm_forward.1} parent=5 // pred_region
      %s288 = ssub.s32 %s15, 1
      %s289 = smul.u32 4, %s20
      %p290 = scmp.lt.s32.totalorder %s289, 7
      %s291 = scalar_select %p290, %s289, 7
      %s292 = smul.addr %s291, 8
      %s293 = scalar_lea.vmem %s0, %s292
      %p294 = pneg %p41
      %p295 = pneg %p38
      %p296 = pneg %p62
      %p297 = pneg %p59
      %p298 = pneg %p83
      %p299 = pneg %p80
      %p300 = pneg %p104
      %p301 = pneg %p101
      %p302 = pneg %p125
      %p303 = pneg %p122
      %p304 = pneg %p146
      %p305 = pneg %p143
      %p306 = pneg %p167
      %p307 = pneg %p164
      %p308 = pneg %p188
      %p309 = pneg %p185
      %p310 = pneg %p209
      %p311 = pneg %p206
      %p312 = pneg %p230
      %p313 = pneg %p227
      %s314 = smul.u32 4, %s20
      %p315 = scmp.lt.s32.totalorder %s314, 7
      %s316 = scalar_select %p315, %s314, 7
      %s317 = smul.addr %s316, 8
      %s318 = scalar_lea.vmem %s0, %s317
      %s319 = smul.u32 4, %s20
      %p320 = scmp.eq.s32.totalorder %s20, 0
      // Predicated region
      $region57: #{lstm_forward.1} parent=55 // pred_check
        %p321 = pneg %p320
      $region58: #{lstm_forward.1} parent=55 // pred_check_branch
        %323 = sbr.rel (%p321) target = $region60
      $region59: #{lstm_forward.1} parent=55 // pred_region
        %vm324 = vcmask 261120
        %325 = vst.msk [vmem:[#allocation4] sm:$0xff] %vm324, 0.0
        %326 = vst.msk [vmem:[#allocation5] sm:$0xff] %vm324, 0.0
        %327 = vst.msk [vmem:[#allocation6] sm:$0xff] %vm324, 0.0
        %328 = vst.msk [vmem:[#allocation7] sm:$0xff] %vm324, 0.0
      $region60: #{lstm_forward.1} parent=55 // pred_fallthru
        _
      %v329 = vld [vmem:[%s318] sm:$0xff]
      %v330 = vld [vmem:[%s318 + $0x8] sm:$0xff]
      %v331 = vld [vmem:[%s318 + $0x10] sm:$0xff]
      %v332 = vld [vmem:[%s318 + $0x18] sm:$0xff]
      %v333 = vld [vmem:[%s1] sm:$0xff]
      %v334 = vld [vmem:[%s1 + $0x8] sm:$0xff]
      %v335 = vld [vmem:[%s3] sm:$0x1]
      %v337 = vlaneseq
      %v338 = vshrl.u32 %v337, 7
      %v339 = vsub.s32 0, %v338
      %v340 = vrot.slane %v335, %v339
      %vm342 = vcmask 130048
      %v344 = vsel %vm342, %v329, 0
      %v347 = vsel %vm342, %v330, 0
      %v350 = vsel %vm342, %v331, 0
      %v353 = vsel %vm342, %v332, 0
      %355 = vmatprep.subr.mxu0 0.0
      %356 = vmatpush1.msra.mxu0 0.0
      %357 = vmatprep.subr.mxu0 0.0
      %358 = vmatpush1.msra.mxu0 0.0
      %359 = vmatprep.subr.mxu0 0.0
      %360 = vmatpush1.msra.mxu0 0.0
      %361 = vmatprep.subr.mxu0 0.0
      %362 = vmatpush1.msra.mxu0 0.0
      %363 = vmatprep.subr.mxu0 0.0
      %364 = vmatpush1.msra.mxu0 0.0
      %365 = vmatprep.subr.mxu0 0.0
      %366 = vmatpush1.msra.mxu0 0.0
      %367 = vmatprep.subr.mxu0 0.0
      %368 = vmatpush1.msra.mxu0 0.0
      %369 = vmatprep.subr.mxu0 0.0
      %370 = vmatpush1.msra.mxu0 0.0
      %371 = vmatprep.subr.mxu0 0.0
      %372 = vmatpush1.msra.mxu0 0.0
      %373 = vmatprep.subr.mxu0 0.0
      %374 = vmatpush1.msra.mxu0 0.0
      %375 = vmatprep.subr.mxu0 0.0
      %376 = vmatpush1.msra.mxu0 0.0
      %377 = vmatprep.subr.mxu0 0.0
      %378 = vmatpush1.msra.mxu0 0.0
      %379 = vmatprep.subr.mxu0 0.0
      %380 = vmatpush1.msra.mxu0 0.0
      %381 = vmatprep.subr.mxu0 0.0
      %382 = vmatpush1.msra.mxu0 0.0
      %383 = vmatprep.subr.mxu0 0.0
      %384 = vmatpush1.msra.mxu0 %v334
      %385 = vmatprep.subr.mxu0 0.0
      %386 = vmatpush1.msra.mxu0 %v333
      %387 = vmatprep.subr.mxu0 0.0
      %388 = vmatpush2.msra.mxu0 0.0
      %389 = vmatprep.subr.mxu0 0.0
      %390 = vmatpush2.msra.mxu0 0.0
      %391 = vmatprep.subr.mxu0 0.0
      %392 = vmatpush2.msra.mxu0 0.0
      %393 = vmatprep.subr.mxu0 0.0
      %394 = vmatpush2.msra.mxu0 0.0
      %395 = vmatprep.subr.mxu0 0.0
      %396 = vmatpush2.msra.mxu0 0.0
      %397 = vmatprep.subr.mxu0 0.0
      %398 = vmatpush2.msra.mxu0 0.0
      %399 = vmatprep.subr.mxu0 0.0
      %400 = vmatpush2.msra.mxu0 0.0
      %401 = vmatprep.subr.mxu0 0.0
      %402 = vmatpush2.msra.mxu0 0.0
      %403 = vmatprep.subr.mxu0 0.0
      %404 = vmatpush2.msra.mxu0 0.0
      %405 = vmatprep.subr.mxu0 0.0
      %406 = vmatpush2.msra.mxu0 0.0
      %407 = vmatprep.subr.mxu0 0.0
      %408 = vmatpush2.msra.mxu0 0.0
      %409 = vmatprep.subr.mxu0 0.0
      %410 = vmatpush2.msra.mxu0 0.0
      %411 = vmatprep.subr.mxu0 0.0
      %412 = vmatpush2.msra.mxu0 0.0
      %413 = vmatprep.subr.mxu0 0.0
      %414 = vmatpush2.msra.mxu0 0.0
      %415 = vmatprep.subr.mxu0 0.0
      %416 = vmatpush2.msra.mxu0 0.0
      %417 = vmatprep.subr.mxu0 0.0
      %418 = vmatpush2.msra.mxu0 0.0
      %419 = vmatprep.mubr.f32.mxu0 0.0
      %420 = vmatmul.mubr.f32.gmra.mxu0 %v344
      %v421 = vpop.f32.mrf.mxu0
      %v422 = vadd.f32 %v340, %v421
      %v423 = vpop.f32.mrf.mxu0
      %424 = vmatprep.mubr.f32.mxu0 0.0
      %425 = vmatmul.mubr.f32.gmra.mxu0 %v347
      %v426 = vpop.f32.mrf.mxu0
      %v427 = vadd.f32 %v340, %v426
      %v428 = vpop.f32.mrf.mxu0
      %429 = vmatprep.mubr.f32.mxu0 0.0
      %430 = vmatmul.mubr.f32.gmra.mxu0 %v350
      %v431 = vpop.f32.mrf.mxu0
      %v432 = vadd.f32 %v340, %v431
      %v433 = vpop.f32.mrf.mxu0
      %434 = vmatprep.mubr.f32.mxu0 0.0
      %435 = vmatmul.mubr.f32.gmra.mxu0 %v353
      %v436 = vpop.f32.mrf.mxu0
      %v437 = vadd.f32 %v340, %v436
      %v438 = vpop.f32.mrf.mxu0
      %439 = vdwg.mxu0
      %440 = vst [vmem:[#allocation2] sm:$0xff] %v422
      %441 = vst [vmem:[#allocation2 + $0x8] sm:$0xff] %v427
      %442 = vst [vmem:[#allocation2 + $0x10] sm:$0xff] %v432
      %443 = vst [vmem:[#allocation2 + $0x18] sm:$0xff] %v437
      %v444 = vld [vmem:[%s2] sm:$0xff]
      %v445 = vld [vmem:[%s2 + $0x8] sm:$0xff]
      %v446 = vld [vmem:[%s2 + $0x10] sm:$0xff]
      %v447 = vld [vmem:[%s2 + $0x18] sm:$0xff]
      %v448 = vld [vmem:[#allocation4] sm:$0xff]
      %v449 = vld [vmem:[#allocation5] sm:$0xff]
      %v450 = vld [vmem:[#allocation2] sm:$0xff]
      %vm451 = vcmask 261120
      %v453 = vsel %vm451, %v448, 0
      %455 = vmatprep.subr.mxu0 0.0
      %456 = vmatpush1.msra.mxu0 0.0
      %457 = vmatprep.subr.mxu0 0.0
      %458 = vmatpush1.msra.mxu0 0.0
      %459 = vmatprep.subr.mxu0 0.0
      %460 = vmatpush1.msra.mxu0 0.0
      %461 = vmatprep.subr.mxu0 0.0
      %462 = vmatpush1.msra.mxu0 0.0
      %463 = vmatprep.subr.mxu0 0.0
      %464 = vmatpush1.msra.mxu0 0.0
      %465 = vmatprep.subr.mxu0 0.0
      %466 = vmatpush1.msra.mxu0 0.0
      %467 = vmatprep.subr.mxu0 0.0
      %468 = vmatpush1.msra.mxu0 0.0
      %469 = vmatprep.subr.mxu0 0.0
      %470 = vmatpush1.msra.mxu0 0.0
      %471 = vmatprep.subr.mxu0 0.0
      %472 = vmatpush1.msra.mxu0 0.0
      %473 = vmatprep.subr.mxu0 0.0
      %474 = vmatpush1.msra.mxu0 0.0
      %475 = vmatprep.subr.mxu0 0.0
      %476 = vmatpush1.msra.mxu0 0.0
      %477 = vmatprep.subr.mxu0 0.0
      %478 = vmatpush1.msra.mxu0 0.0
      %479 = vmatprep.subr.mxu0 0.0
      %480 = vmatpush1.msra.mxu0 %v447
      %481 = vmatprep.subr.mxu0 0.0
      %482 = vmatpush1.msra.mxu0 %v446
      %483 = vmatprep.subr.mxu0 0.0
      %484 = vmatpush1.msra.mxu0 %v445
      %485 = vmatprep.subr.mxu0 0.0
      %486 = vmatpush1.msra.mxu0 %v444
      %487 = vmatprep.subr.mxu0 0.0
      %488 = vmatpush2.msra.mxu0 0.0
      %489 = vmatprep.subr.mxu0 0.0
      %490 = vmatpush2.msra.mxu0 0.0
      %491 = vmatprep.subr.mxu0 0.0
      %492 = vmatpush2.msra.mxu0 0.0
      %493 = vmatprep.subr.mxu0 0.0
      %494 = vmatpush2.msra.mxu0 0.0
      %495 = vmatprep.subr.mxu0 0.0
      %496 = vmatpush2.msra.mxu0 0.0
      %497 = vmatprep.subr.mxu0 0.0
      %498 = vmatpush2.msra.mxu0 0.0
      %499 = vmatprep.subr.mxu0 0.0
      %500 = vmatpush2.msra.mxu0 0.0
      %501 = vmatprep.subr.mxu0 0.0
      %502 = vmatpush2.msra.mxu0 0.0
      %503 = vmatprep.subr.mxu0 0.0
      %504 = vmatpush2.msra.mxu0 0.0
      %505 = vmatprep.subr.mxu0 0.0
      %506 = vmatpush2.msra.mxu0 0.0
      %507 = vmatprep.subr.mxu0 0.0
      %508 = vmatpush2.msra.mxu0 0.0
      %509 = vmatprep.subr.mxu0 0.0
      %510 = vmatpush2.msra.mxu0 0.0
      %511 = vmatprep.subr.mxu0 0.0
      %512 = vmatpush2.msra.mxu0 0.0
      %513 = vmatprep.subr.mxu0 0.0
      %514 = vmatpush2.msra.mxu0 0.0
      %515 = vmatprep.subr.mxu0 0.0
      %516 = vmatpush2.msra.mxu0 0.0
      %517 = vmatprep.subr.mxu0 0.0
      %518 = vmatpush2.msra.mxu0 0.0
      %519 = vmatprep.mubr.f32.mxu0 0.0
      %520 = vmatmul.mubr.f32.gmra.mxu0 %v453
      %v521 = vpop.f32.mrf.mxu0
      %v522 = vadd.f32 0.0, %v521
      %v523 = vpop.f32.mrf.mxu0
      %524 = vdwg.mxu0
      %v525 = vadd.f32 %v450, %v522
      %v526 = vmul.f32 %v525, 0.5
      %v527 = vtanh.pop %v526
      %v528 = vmul.f32 %v527, 0.5
      %v529 = vadd.f32 %v528, 0.5
      %v530 = vtanh.pop %v525
      %532 = vrot.lane.b32.xlu0 %v449, 32
      %v533 = vpop.permute.xlu0 %532
      %v535 = vmul.f32 %v529, %v533
      %537 = vrot.lane.b32.xlu0 %v530, 64
      %v538 = vpop.permute.xlu0 %537
      %v540 = vmul.f32 %v529, %v538
      %542 = vrot.lane.b32.xlu0 %v540, 32
      %v543 = vpop.permute.xlu0 %542
      %v545 = vadd.f32 %v535, %v543
      %v546 = vtanh.pop %v545
      %548 = vrot.lane.b32.xlu0 %v546, 64
      %v549 = vpop.permute.xlu0 %548
      %v551 = vmul.f32 %v529, %v549
      %553 = vrot.lane.b32.xlu0 %v551, 32
      %v554 = vpop.permute.xlu0 %553
      %556 = vst.msk [vmem:[#allocation3] sm:$0xff] %vm451, %v554
      %s557 = scalar_lea.vmem [#allocation2], 8
      %v558 = vld [vmem:[%s557] sm:$0xff]
      %v559 = vsel %vm451, %v554, 0
      %561 = vmatprep.subr.mxu0 0.0
      %562 = vmatpush1.msra.mxu0 0.0
      %563 = vmatprep.subr.mxu0 0.0
      %564 = vmatpush1.msra.mxu0 0.0
      %565 = vmatprep.subr.mxu0 0.0
      %566 = vmatpush1.msra.mxu0 0.0
      %567 = vmatprep.subr.mxu0 0.0
      %568 = vmatpush1.msra.mxu0 0.0
      %569 = vmatprep.subr.mxu0 0.0
      %570 = vmatpush1.msra.mxu0 0.0
      %571 = vmatprep.subr.mxu0 0.0
      %572 = vmatpush1.msra.mxu0 0.0
      %573 = vmatprep.subr.mxu0 0.0
      %574 = vmatpush1.msra.mxu0 0.0
      %575 = vmatprep.subr.mxu0 0.0
      %576 = vmatpush1.msra.mxu0 0.0
      %577 = vmatprep.subr.mxu0 0.0
      %578 = vmatpush1.msra.mxu0 0.0
      %579 = vmatprep.subr.mxu0 0.0
      %580 = vmatpush1.msra.mxu0 0.0
      %581 = vmatprep.subr.mxu0 0.0
      %582 = vmatpush1.msra.mxu0 0.0
      %583 = vmatprep.subr.mxu0 0.0
      %584 = vmatpush1.msra.mxu0 0.0
      %585 = vmatprep.subr.mxu0 0.0
      %586 = vmatpush1.msra.mxu0 %v447
      %587 = vmatprep.subr.mxu0 0.0
      %588 = vmatpush1.msra.mxu0 %v446
      %589 = vmatprep.subr.mxu0 0.0
      %590 = vmatpush1.msra.mxu0 %v445
      %591 = vmatprep.subr.mxu0 0.0
      %592 = vmatpush1.msra.mxu0 %v444
      %593 = vmatprep.subr.mxu0 0.0
      %594 = vmatpush2.msra.mxu0 0.0
      %595 = vmatprep.subr.mxu0 0.0
      %596 = vmatpush2.msra.mxu0 0.0
      %597 = vmatprep.subr.mxu0 0.0
      %598 = vmatpush2.msra.mxu0 0.0
      %599 = vmatprep.subr.mxu0 0.0
      %600 = vmatpush2.msra.mxu0 0.0
      %601 = vmatprep.subr.mxu0 0.0
      %602 = vmatpush2.msra.mxu0 0.0
      %603 = vmatprep.subr.mxu0 0.0
      %604 = vmatpush2.msra.mxu0 0.0
      %605 = vmatprep.subr.mxu0 0.0
      %606 = vmatpush2.msra.mxu0 0.0
      %607 = vmatprep.subr.mxu0 0.0
      %608 = vmatpush2.msra.mxu0 0.0
      %609 = vmatprep.subr.mxu0 0.0
      %610 = vmatpush2.msra.mxu0 0.0
      %611 = vmatprep.subr.mxu0 0.0
      %612 = vmatpush2.msra.mxu0 0.0
      %613 = vmatprep.subr.mxu0 0.0
      %614 = vmatpush2.msra.mxu0 0.0
      %615 = vmatprep.subr.mxu0 0.0
      %616 = vmatpush2.msra.mxu0 0.0
      %617 = vmatprep.subr.mxu0 0.0
      %618 = vmatpush2.msra.mxu0 0.0
      %619 = vmatprep.subr.mxu0 0.0
      %620 = vmatpush2.msra.mxu0 0.0
      %621 = vmatprep.subr.mxu0 0.0
      %622 = vmatpush2.msra.mxu0 0.0
      %623 = vmatprep.subr.mxu0 0.0
      %624 = vmatpush2.msra.mxu0 0.0
      %625 = vmatprep.mubr.f32.mxu0 0.0
      %626 = vmatmul.mubr.f32.gmra.mxu0 %v559
      %v627 = vpop.f32.mrf.mxu0
      %v628 = vadd.f32 0.0, %v627
      %v629 = vpop.f32.mrf.mxu0
      %630 = vdwg.mxu0
      %v631 = vadd.f32 %v558, %v628
      %v632 = vmul.f32 %v631, 0.5
      %v633 = vtanh.pop %v632
      %v634 = vmul.f32 %v633, 0.5
      %v635 = vadd.f32 %v634, 0.5
      %v636 = vtanh.pop %v631
      %v637 = vmul.f32 %v635, %v545
      %639 = vrot.lane.b32.xlu0 %v636, 64
      %v640 = vpop.permute.xlu0 %639
      %v642 = vmul.f32 %v635, %v640
      %644 = vrot.lane.b32.xlu0 %v642, 32
      %v645 = vpop.permute.xlu0 %644
      %v647 = vadd.f32 %v637, %v645
      %v648 = vtanh.pop %v647
      %650 = vrot.lane.b32.xlu0 %v648, 64
      %v651 = vpop.permute.xlu0 %650
      %v653 = vmul.f32 %v635, %v651
      %655 = vrot.lane.b32.xlu0 %v653, 32
      %v656 = vpop.permute.xlu0 %655
      %s658 = scalar_lea.vmem [#allocation3], 8
      %659 = vst.msk [vmem:[%s658] sm:$0xff] %vm451, %v656
      %s660 = scalar_lea.vmem [#allocation2], 16
      %v661 = vld [vmem:[%s660] sm:$0xff]
      %v662 = vsel %vm451, %v656, 0
      %664 = vmatprep.subr.mxu0 0.0
      %665 = vmatpush1.msra.mxu0 0.0
      %666 = vmatprep.subr.mxu0 0.0
      %667 = vmatpush1.msra.mxu0 0.0
      %668 = vmatprep.subr.mxu0 0.0
      %669 = vmatpush1.msra.mxu0 0.0
      %670 = vmatprep.subr.mxu0 0.0
      %671 = vmatpush1.msra.mxu0 0.0
      %672 = vmatprep.subr.mxu0 0.0
      %673 = vmatpush1.msra.mxu0 0.0
      %674 = vmatprep.subr.mxu0 0.0
      %675 = vmatpush1.msra.mxu0 0.0
      %676 = vmatprep.subr.mxu0 0.0
      %677 = vmatpush1.msra.mxu0 0.0
      %678 = vmatprep.subr.mxu0 0.0
      %679 = vmatpush1.msra.mxu0 0.0
      %680 = vmatprep.subr.mxu0 0.0
      %681 = vmatpush1.msra.mxu0 0.0
      %682 = vmatprep.subr.mxu0 0.0
      %683 = vmatpush1.msra.mxu0 0.0
      %684 = vmatprep.subr.mxu0 0.0
      %685 = vmatpush1.msra.mxu0 0.0
      %686 = vmatprep.subr.mxu0 0.0
      %687 = vmatpush1.msra.mxu0 0.0
      %688 = vmatprep.subr.mxu0 0.0
      %689 = vmatpush1.msra.mxu0 %v447
      %690 = vmatprep.subr.mxu0 0.0
      %691 = vmatpush1.msra.mxu0 %v446
      %692 = vmatprep.subr.mxu0 0.0
      %693 = vmatpush1.msra.mxu0 %v445
      %694 = vmatprep.subr.mxu0 0.0
      %695 = vmatpush1.msra.mxu0 %v444
      %696 = vmatprep.subr.mxu0 0.0
      %697 = vmatpush2.msra.mxu0 0.0
      %698 = vmatprep.subr.mxu0 0.0
      %699 = vmatpush2.msra.mxu0 0.0
      %700 = vmatprep.subr.mxu0 0.0
      %701 = vmatpush2.msra.mxu0 0.0
      %702 = vmatprep.subr.mxu0 0.0
      %703 = vmatpush2.msra.mxu0 0.0
      %704 = vmatprep.subr.mxu0 0.0
      %705 = vmatpush2.msra.mxu0 0.0
      %706 = vmatprep.subr.mxu0 0.0
      %707 = vmatpush2.msra.mxu0 0.0
      %708 = vmatprep.subr.mxu0 0.0
      %709 = vmatpush2.msra.mxu0 0.0
      %710 = vmatprep.subr.mxu0 0.0
      %711 = vmatpush2.msra.mxu0 0.0
      %712 = vmatprep.subr.mxu0 0.0
      %713 = vmatpush2.msra.mxu0 0.0
      %714 = vmatprep.subr.mxu0 0.0
      %715 = vmatpush2.msra.mxu0 0.0
      %716 = vmatprep.subr.mxu0 0.0
      %717 = vmatpush2.msra.mxu0 0.0
      %718 = vmatprep.subr.mxu0 0.0
      %719 = vmatpush2.msra.mxu0 0.0
      %720 = vmatprep.subr.mxu0 0.0
      %721 = vmatpush2.msra.mxu0 0.0
      %722 = vmatprep.subr.mxu0 0.0
      %723 = vmatpush2.msra.mxu0 0.0
      %724 = vmatprep.subr.mxu0 0.0
      %725 = vmatpush2.msra.mxu0 0.0
      %726 = vmatprep.subr.mxu0 0.0
      %727 = vmatpush2.msra.mxu0 0.0
      %728 = vmatprep.mubr.f32.mxu0 0.0
      %729 = vmatmul.mubr.f32.gmra.mxu0 %v662
      %v730 = vpop.f32.mrf.mxu0
      %v731 = vadd.f32 0.0, %v730
      %v732 = vpop.f32.mrf.mxu0
      %733 = vdwg.mxu0
      %v734 = vadd.f32 %v661, %v731
      %v735 = vmul.f32 %v734, 0.5
      %v736 = vtanh.pop %v735
      %v737 = vmul.f32 %v736, 0.5
      %v738 = vadd.f32 %v737, 0.5
      %v739 = vtanh.pop %v734
      %v740 = vmul.f32 %v738, %v647
      %742 = vrot.lane.b32.xlu0 %v739, 64
      %v743 = vpop.permute.xlu0 %742
      %v745 = vmul.f32 %v738, %v743
      %747 = vrot.lane.b32.xlu0 %v745, 32
      %v748 = vpop.permute.xlu0 %747
      %v750 = vadd.f32 %v740, %v748
      %v751 = vtanh.pop %v750
      %753 = vrot.lane.b32.xlu0 %v751, 64
      %v754 = vpop.permute.xlu0 %753
      %v756 = vmul.f32 %v738, %v754
      %758 = vrot.lane.b32.xlu0 %v756, 32
      %v759 = vpop.permute.xlu0 %758
      %s761 = scalar_lea.vmem [#allocation3], 16
      %762 = vst.msk [vmem:[%s761] sm:$0xff] %vm451, %v759
      %s763 = scalar_lea.vmem [#allocation2], 24
      %v764 = vld [vmem:[%s763] sm:$0xff]
      %v765 = vsel %vm451, %v759, 0
      %767 = vmatprep.subr.mxu0 0.0
      %768 = vmatpush1.msra.mxu0 0.0
      %769 = vmatprep.subr.mxu0 0.0
      %770 = vmatpush1.msra.mxu0 0.0
      %771 = vmatprep.subr.mxu0 0.0
      %772 = vmatpush1.msra.mxu0 0.0
      %773 = vmatprep.subr.mxu0 0.0
      %774 = vmatpush1.msra.mxu0 0.0
      %775 = vmatprep.subr.mxu0 0.0
      %776 = vmatpush1.msra.mxu0 0.0
      %777 = vmatprep.subr.mxu0 0.0
      %778 = vmatpush1.msra.mxu0 0.0
      %779 = vmatprep.subr.mxu0 0.0
      %780 = vmatpush1.msra.mxu0 0.0
      %781 = vmatprep.subr.mxu0 0.0
      %782 = vmatpush1.msra.mxu0 0.0
      %783 = vmatprep.subr.mxu0 0.0
      %784 = vmatpush1.msra.mxu0 0.0
      %785 = vmatprep.subr.mxu0 0.0
      %786 = vmatpush1.msra.mxu0 0.0
      %787 = vmatprep.subr.mxu0 0.0
      %788 = vmatpush1.msra.mxu0 0.0
      %789 = vmatprep.subr.mxu0 0.0
      %790 = vmatpush1.msra.mxu0 0.0
      %791 = vmatprep.subr.mxu0 0.0
      %792 = vmatpush1.msra.mxu0 %v447
      %793 = vmatprep.subr.mxu0 0.0
      %794 = vmatpush1.msra.mxu0 %v446
      %795 = vmatprep.subr.mxu0 0.0
      %796 = vmatpush1.msra.mxu0 %v445
      %797 = vmatprep.subr.mxu0 0.0
      %798 = vmatpush1.msra.mxu0 %v444
      %799 = vmatprep.subr.mxu0 0.0
      %800 = vmatpush2.msra.mxu0 0.0
      %801 = vmatprep.subr.mxu0 0.0
      %802 = vmatpush2.msra.mxu0 0.0
      %803 = vmatprep.subr.mxu0 0.0
      %804 = vmatpush2.msra.mxu0 0.0
      %805 = vmatprep.subr.mxu0 0.0
      %806 = vmatpush2.msra.mxu0 0.0
      %807 = vmatprep.subr.mxu0 0.0
      %808 = vmatpush2.msra.mxu0 0.0
      %809 = vmatprep.subr.mxu0 0.0
      %810 = vmatpush2.msra.mxu0 0.0
      %811 = vmatprep.subr.mxu0 0.0
      %812 = vmatpush2.msra.mxu0 0.0
      %813 = vmatprep.subr.mxu0 0.0
      %814 = vmatpush2.msra.mxu0 0.0
      %815 = vmatprep.subr.mxu0 0.0
      %816 = vmatpush2.msra.mxu0 0.0
      %817 = vmatprep.subr.mxu0 0.0
      %818 = vmatpush2.msra.mxu0 0.0
      %819 = vmatprep.subr.mxu0 0.0
      %820 = vmatpush2.msra.mxu0 0.0
      %821 = vmatprep.subr.mxu0 0.0
      %822 = vmatpush2.msra.mxu0 0.0
      %823 = vmatprep.subr.mxu0 0.0
      %824 = vmatpush2.msra.mxu0 0.0
      %825 = vmatprep.subr.mxu0 0.0
      %826 = vmatpush2.msra.mxu0 0.0
      %827 = vmatprep.subr.mxu0 0.0
      %828 = vmatpush2.msra.mxu0 0.0
      %829 = vmatprep.subr.mxu0 0.0
      %830 = vmatpush2.msra.mxu0 0.0
      %831 = vmatprep.mubr.f32.mxu0 0.0
      %832 = vmatmul.mubr.f32.gmra.mxu0 %v765
      %v833 = vpop.f32.mrf.mxu0
      %v834 = vadd.f32 0.0, %v833
      %v835 = vpop.f32.mrf.mxu0
      %836 = vdwg.mxu0
      %v837 = vadd.f32 %v764, %v834
      %v838 = vmul.f32 %v837, 0.5
      %v839 = vtanh.pop %v838
      %v840 = vmul.f32 %v839, 0.5
      %v841 = vadd.f32 %v840, 0.5
      %v842 = vtanh.pop %v837
      %v843 = vmul.f32 %v841, %v750
      %845 = vrot.lane.b32.xlu0 %v842, 64
      %v846 = vpop.permute.xlu0 %845
      %v848 = vmul.f32 %v841, %v846
      %850 = vrot.lane.b32.xlu0 %v848, 32
      %v851 = vpop.permute.xlu0 %850
      %v853 = vadd.f32 %v843, %v851
      %v854 = vtanh.pop %v853
      %856 = vrot.lane.b32.xlu0 %v854, 64
      %v857 = vpop.permute.xlu0 %856
      %v859 = vmul.f32 %v841, %v857
      %861 = vrot.lane.b32.xlu0 %v859, 32
      %v862 = vpop.permute.xlu0 %861
      %s864 = scalar_lea.vmem [#allocation3], 24
      %865 = vst.msk [vmem:[%s864] sm:$0xff] %vm451, %v862
      %866 = vst.msk [vmem:[#allocation4] sm:$0xff] %vm451, %v862
      %868 = vrot.lane.b32.xlu0 %v853, 96
      %v869 = vpop.permute.xlu0 %868
      %871 = vst.msk [vmem:[#allocation5] sm:$0xff] %vm451, %v869
      %v872 = vld [vmem:[%s4] sm:$0xff]
      %v873 = vld [vmem:[%s4 + $0x8] sm:$0xff]
      %v874 = vld [vmem:[%s4 + $0x10] sm:$0xff]
      %v875 = vld [vmem:[%s4 + $0x18] sm:$0xff]
      %v876 = vld [vmem:[#allocation3] sm:$0xff]
      %v877 = vld [vmem:[#allocation3 + $0x8] sm:$0xff]
      %v878 = vld [vmem:[#allocation3 + $0x10] sm:$0xff]
      %v879 = vld [vmem:[#allocation3 + $0x18] sm:$0xff]
      %v880 = vld [vmem:[%s6] sm:$0x1]
      %v882 = vlaneseq
      %v883 = vshrl.u32 %v882, 7
      %v884 = vsub.s32 0, %v883
      %v885 = vrot.slane %v880, %v884
      %v888 = vsel %vm451, %v876, 0
      %v891 = vsel %vm451, %v877, 0
      %v894 = vsel %vm451, %v878, 0
      %v897 = vsel %vm451, %v879, 0
      %899 = vmatprep.subr.mxu0 0.0
      %900 = vmatpush1.msra.mxu0 0.0
      %901 = vmatprep.subr.mxu0 0.0
      %902 = vmatpush1.msra.mxu0 0.0
      %903 = vmatprep.subr.mxu0 0.0
      %904 = vmatpush1.msra.mxu0 0.0
      %905 = vmatprep.subr.mxu0 0.0
      %906 = vmatpush1.msra.mxu0 0.0
      %907 = vmatprep.subr.mxu0 0.0
      %908 = vmatpush1.msra.mxu0 0.0
      %909 = vmatprep.subr.mxu0 0.0
      %910 = vmatpush1.msra.mxu0 0.0
      %911 = vmatprep.subr.mxu0 0.0
      %912 = vmatpush1.msra.mxu0 0.0
      %913 = vmatprep.subr.mxu0 0.0
      %914 = vmatpush1.msra.mxu0 0.0
      %915 = vmatprep.subr.mxu0 0.0
      %916 = vmatpush1.msra.mxu0 0.0
      %917 = vmatprep.subr.mxu0 0.0
      %918 = vmatpush1.msra.mxu0 0.0
      %919 = vmatprep.subr.mxu0 0.0
      %920 = vmatpush1.msra.mxu0 0.0
      %921 = vmatprep.subr.mxu0 0.0
      %922 = vmatpush1.msra.mxu0 0.0
      %923 = vmatprep.subr.mxu0 0.0
      %924 = vmatpush1.msra.mxu0 %v875
      %925 = vmatprep.subr.mxu0 0.0
      %926 = vmatpush1.msra.mxu0 %v874
      %927 = vmatprep.subr.mxu0 0.0
      %928 = vmatpush1.msra.mxu0 %v873
      %929 = vmatprep.subr.mxu0 0.0
      %930 = vmatpush1.msra.mxu0 %v872
      %931 = vmatprep.subr.mxu0 0.0
      %932 = vmatpush2.msra.mxu0 0.0
      %933 = vmatprep.subr.mxu0 0.0
      %934 = vmatpush2.msra.mxu0 0.0
      %935 = vmatprep.subr.mxu0 0.0
      %936 = vmatpush2.msra.mxu0 0.0
      %937 = vmatprep.subr.mxu0 0.0
      %938 = vmatpush2.msra.mxu0 0.0
      %939 = vmatprep.subr.mxu0 0.0
      %940 = vmatpush2.msra.mxu0 0.0
      %941 = vmatprep.subr.mxu0 0.0
      %942 = vmatpush2.msra.mxu0 0.0
      %943 = vmatprep.subr.mxu0 0.0
      %944 = vmatpush2.msra.mxu0 0.0
      %945 = vmatprep.subr.mxu0 0.0
      %946 = vmatpush2.msra.mxu0 0.0
      %947 = vmatprep.subr.mxu0 0.0
      %948 = vmatpush2.msra.mxu0 0.0
      %949 = vmatprep.subr.mxu0 0.0
      %950 = vmatpush2.msra.mxu0 0.0
      %951 = vmatprep.subr.mxu0 0.0
      %952 = vmatpush2.msra.mxu0 0.0
      %953 = vmatprep.subr.mxu0 0.0
      %954 = vmatpush2.msra.mxu0 0.0
      %955 = vmatprep.subr.mxu0 0.0
      %956 = vmatpush2.msra.mxu0 0.0
      %957 = vmatprep.subr.mxu0 0.0
      %958 = vmatpush2.msra.mxu0 0.0
      %959 = vmatprep.subr.mxu0 0.0
      %960 = vmatpush2.msra.mxu0 0.0
      %961 = vmatprep.subr.mxu0 0.0
      %962 = vmatpush2.msra.mxu0 0.0
      %963 = vmatprep.mubr.f32.mxu0 0.0
      %964 = vmatmul.mubr.f32.gmra.mxu0 %v888
      %v965 = vpop.f32.mrf.mxu0
      %v966 = vadd.f32 %v885, %v965
      %v967 = vpop.f32.mrf.mxu0
      %968 = vmatprep.mubr.f32.mxu0 0.0
      %969 = vmatmul.mubr.f32.gmra.mxu0 %v891
      %v970 = vpop.f32.mrf.mxu0
      %v971 = vadd.f32 %v885, %v970
      %v972 = vpop.f32.mrf.mxu0
      %973 = vmatprep.mubr.f32.mxu0 0.0
      %974 = vmatmul.mubr.f32.gmra.mxu0 %v894
      %v975 = vpop.f32.mrf.mxu0
      %v976 = vadd.f32 %v885, %v975
      %v977 = vpop.f32.mrf.mxu0
      %978 = vmatprep.mubr.f32.mxu0 0.0
      %979 = vmatmul.mubr.f32.gmra.mxu0 %v897
      %v980 = vpop.f32.mrf.mxu0
      %v981 = vadd.f32 %v885, %v980
      %v982 = vpop.f32.mrf.mxu0
      %983 = vdwg.mxu0
      %984 = vst [vmem:[#allocation2] sm:$0xff] %v966
      %985 = vst [vmem:[#allocation2 + $0x8] sm:$0xff] %v971
      %986 = vst [vmem:[#allocation2 + $0x10] sm:$0xff] %v976
      %987 = vst [vmem:[#allocation2 + $0x18] sm:$0xff] %v981
      %v988 = vld [vmem:[%s5] sm:$0xff]
      %v989 = vld [vmem:[%s5 + $0x8] sm:$0xff]
      %v990 = vld [vmem:[%s5 + $0x10] sm:$0xff]
      %v991 = vld [vmem:[%s5 + $0x18] sm:$0xff]
      %v992 = vld [vmem:[#allocation6] sm:$0xff]
      %v993 = vld [vmem:[#allocation7] sm:$0xff]
      %v994 = vld [vmem:[#allocation2] sm:$0xff]
      %v996 = vsel %vm451, %v992, 0
      %998 = vmatprep.subr.mxu0 0.0
      %999 = vmatpush1.msra.mxu0 0.0
      %1000 = vmatprep.subr.mxu0 0.0
      %1001 = vmatpush1.msra.mxu0 0.0
      %1002 = vmatprep.subr.mxu0 0.0
      %1003 = vmatpush1.msra.mxu0 0.0
      %1004 = vmatprep.subr.mxu0 0.0
      %1005 = vmatpush1.msra.mxu0 0.0
      %1006 = vmatprep.subr.mxu0 0.0
      %1007 = vmatpush1.msra.mxu0 0.0
      %1008 = vmatprep.subr.mxu0 0.0
      %1009 = vmatpush1.msra.mxu0 0.0
      %1010 = vmatprep.subr.mxu0 0.0
      %1011 = vmatpush1.msra.mxu0 0.0
      %1012 = vmatprep.subr.mxu0 0.0
      %1013 = vmatpush1.msra.mxu0 0.0
      %1014 = vmatprep.subr.mxu0 0.0
      %1015 = vmatpush1.msra.mxu0 0.0
      %1016 = vmatprep.subr.mxu0 0.0
      %1017 = vmatpush1.msra.mxu0 0.0
      %1018 = vmatprep.subr.mxu0 0.0
      %1019 = vmatpush1.msra.mxu0 0.0
      %1020 = vmatprep.subr.mxu0 0.0
      %1021 = vmatpush1.msra.mxu0 0.0
      %1022 = vmatprep.subr.mxu0 0.0
      %1023 = vmatpush1.msra.mxu0 %v991
      %1024 = vmatprep.subr.mxu0 0.0
      %1025 = vmatpush1.msra.mxu0 %v990
      %1026 = vmatprep.subr.mxu0 0.0
      %1027 = vmatpush1.msra.mxu0 %v989
      %1028 = vmatprep.subr.mxu0 0.0
      %1029 = vmatpush1.msra.mxu0 %v988
      %1030 = vmatprep.subr.mxu0 0.0
      %1031 = vmatpush2.msra.mxu0 0.0
      %1032 = vmatprep.subr.mxu0 0.0
      %1033 = vmatpush2.msra.mxu0 0.0
      %1034 = vmatprep.subr.mxu0 0.0
      %1035 = vmatpush2.msra.mxu0 0.0
      %1036 = vmatprep.subr.mxu0 0.0
      %1037 = vmatpush2.msra.mxu0 0.0
      %1038 = vmatprep.subr.mxu0 0.0
      %1039 = vmatpush2.msra.mxu0 0.0
      %1040 = vmatprep.subr.mxu0 0.0
      %1041 = vmatpush2.msra.mxu0 0.0
      %1042 = vmatprep.subr.mxu0 0.0
      %1043 = vmatpush2.msra.mxu0 0.0
      %1044 = vmatprep.subr.mxu0 0.0
      %1045 = vmatpush2.msra.mxu0 0.0
      %1046 = vmatprep.subr.mxu0 0.0
      %1047 = vmatpush2.msra.mxu0 0.0
      %1048 = vmatprep.subr.mxu0 0.0
      %1049 = vmatpush2.msra.mxu0 0.0
      %1050 = vmatprep.subr.mxu0 0.0
      %1051 = vmatpush2.msra.mxu0 0.0
      %1052 = vmatprep.subr.mxu0 0.0
      %1053 = vmatpush2.msra.mxu0 0.0
      %1054 = vmatprep.subr.mxu0 0.0
      %1055 = vmatpush2.msra.mxu0 0.0
      %1056 = vmatprep.subr.mxu0 0.0
      %1057 = vmatpush2.msra.mxu0 0.0
      %1058 = vmatprep.subr.mxu0 0.0
      %1059 = vmatpush2.msra.mxu0 0.0
      %1060 = vmatprep.subr.mxu0 0.0
      %1061 = vmatpush2.msra.mxu0 0.0
      %1062 = vmatprep.mubr.f32.mxu0 0.0
      %1063 = vmatmul.mubr.f32.gmra.mxu0 %v996
      %v1064 = vpop.f32.mrf.mxu0
      %v1065 = vadd.f32 0.0, %v1064
      %v1066 = vpop.f32.mrf.mxu0
      %1067 = vdwg.mxu0
      %v1068 = vadd.f32 %v994, %v1065
      %v1069 = vmul.f32 %v1068, 0.5
      %v1070 = vtanh.pop %v1069
      %v1071 = vmul.f32 %v1070, 0.5
      %v1072 = vadd.f32 %v1071, 0.5
      %v1073 = vtanh.pop %v1068
      %1075 = vrot.lane.b32.xlu0 %v993, 32
      %v1076 = vpop.permute.xlu0 %1075
      %v1078 = vmul.f32 %v1072, %v1076
      %1080 = vrot.lane.b32.xlu0 %v1073, 64
      %v1081 = vpop.permute.xlu0 %1080
      %v1083 = vmul.f32 %v1072, %v1081
      %1085 = vrot.lane.b32.xlu0 %v1083, 32
      %v1086 = vpop.permute.xlu0 %1085
      %v1088 = vadd.f32 %v1078, %v1086
      %v1089 = vtanh.pop %v1088
      %1091 = vrot.lane.b32.xlu0 %v1089, 64
      %v1092 = vpop.permute.xlu0 %1091
      %v1094 = vmul.f32 %v1072, %v1092
      %v1095 = vld [vmem:[%s557] sm:$0xff]
      %1097 = vrot.lane.b32.xlu0 %v1094, 32
      %v1098 = vpop.permute.xlu0 %1097
      %v1099 = vsel %vm451, %v1098, 0
      %1101 = vmatprep.subr.mxu0 0.0
      %1102 = vmatpush1.msra.mxu0 0.0
      %1103 = vmatprep.subr.mxu0 0.0
      %1104 = vmatpush1.msra.mxu0 0.0
      %1105 = vmatprep.subr.mxu0 0.0
      %1106 = vmatpush1.msra.mxu0 0.0
      %1107 = vmatprep.subr.mxu0 0.0
      %1108 = vmatpush1.msra.mxu0 0.0
      %1109 = vmatprep.subr.mxu0 0.0
      %1110 = vmatpush1.msra.mxu0 0.0
      %1111 = vmatprep.subr.mxu0 0.0
      %1112 = vmatpush1.msra.mxu0 0.0
      %1113 = vmatprep.subr.mxu0 0.0
      %1114 = vmatpush1.msra.mxu0 0.0
      %1115 = vmatprep.subr.mxu0 0.0
      %1116 = vmatpush1.msra.mxu0 0.0
      %1117 = vmatprep.subr.mxu0 0.0
      %1118 = vmatpush1.msra.mxu0 0.0
      %1119 = vmatprep.subr.mxu0 0.0
      %1120 = vmatpush1.msra.mxu0 0.0
      %1121 = vmatprep.subr.mxu0 0.0
      %1122 = vmatpush1.msra.mxu0 0.0
      %1123 = vmatprep.subr.mxu0 0.0
      %1124 = vmatpush1.msra.mxu0 0.0
      %1125 = vmatprep.subr.mxu0 0.0
      %1126 = vmatpush1.msra.mxu0 %v991
      %1127 = vmatprep.subr.mxu0 0.0
      %1128 = vmatpush1.msra.mxu0 %v990
      %1129 = vmatprep.subr.mxu0 0.0
      %1130 = vmatpush1.msra.mxu0 %v989
      %1131 = vmatprep.subr.mxu0 0.0
      %1132 = vmatpush1.msra.mxu0 %v988
      %1133 = vmatprep.subr.mxu0 0.0
      %1134 = vmatpush2.msra.mxu0 0.0
      %1135 = vmatprep.subr.mxu0 0.0
      %1136 = vmatpush2.msra.mxu0 0.0
      %1137 = vmatprep.subr.mxu0 0.0
      %1138 = vmatpush2.msra.mxu0 0.0
      %1139 = vmatprep.subr.mxu0 0.0
      %1140 = vmatpush2.msra.mxu0 0.0
      %1141 = vmatprep.subr.mxu0 0.0
      %1142 = vmatpush2.msra.mxu0 0.0
      %1143 = vmatprep.subr.mxu0 0.0
      %1144 = vmatpush2.msra.mxu0 0.0
      %1145 = vmatprep.subr.mxu0 0.0
      %1146 = vmatpush2.msra.mxu0 0.0
      %1147 = vmatprep.subr.mxu0 0.0
      %1148 = vmatpush2.msra.mxu0 0.0
      %1149 = vmatprep.subr.mxu0 0.0
      %1150 = vmatpush2.msra.mxu0 0.0
      %1151 = vmatprep.subr.mxu0 0.0
      %1152 = vmatpush2.msra.mxu0 0.0
      %1153 = vmatprep.subr.mxu0 0.0
      %1154 = vmatpush2.msra.mxu0 0.0
      %1155 = vmatprep.subr.mxu0 0.0
      %1156 = vmatpush2.msra.mxu0 0.0
      %1157 = vmatprep.subr.mxu0 0.0
      %1158 = vmatpush2.msra.mxu0 0.0
      %1159 = vmatprep.subr.mxu0 0.0
      %1160 = vmatpush2.msra.mxu0 0.0
      %1161 = vmatprep.subr.mxu0 0.0
      %1162 = vmatpush2.msra.mxu0 0.0
      %1163 = vmatprep.subr.mxu0 0.0
      %1164 = vmatpush2.msra.mxu0 0.0
      %1165 = vmatprep.mubr.f32.mxu0 0.0
      %1166 = vmatmul.mubr.f32.gmra.mxu0 %v1099
      %v1167 = vpop.f32.mrf.mxu0
      %v1168 = vadd.f32 0.0, %v1167
      %v1169 = vpop.f32.mrf.mxu0
      %1170 = vdwg.mxu0
      %v1171 = vadd.f32 %v1095, %v1168
      %v1172 = vmul.f32 %v1171, 0.5
      %v1173 = vtanh.pop %v1172
      %v1174 = vmul.f32 %v1173, 0.5
      %v1175 = vadd.f32 %v1174, 0.5
      %v1176 = vtanh.pop %v1171
      %v1177 = vmul.f32 %v1175, %v1088
      %1179 = vrot.lane.b32.xlu0 %v1176, 64
      %v1180 = vpop.permute.xlu0 %1179
      %v1182 = vmul.f32 %v1175, %v1180
      %1184 = vrot.lane.b32.xlu0 %v1182, 32
      %v1185 = vpop.permute.xlu0 %1184
      %v1187 = vadd.f32 %v1177, %v1185
      %v1188 = vtanh.pop %v1187
      %1190 = vrot.lane.b32.xlu0 %v1188, 64
      %v1191 = vpop.permute.xlu0 %1190
      %v1193 = vmul.f32 %v1175, %v1191
      %v1194 = vld [vmem:[%s660] sm:$0xff]
      %1196 = vrot.lane.b32.xlu0 %v1193, 32
      %v1197 = vpop.permute.xlu0 %1196
      %v1198 = vsel %vm451, %v1197, 0
      %1200 = vmatprep.subr.mxu0 0.0
      %1201 = vmatpush1.msra.mxu0 0.0
      %1202 = vmatprep.subr.mxu0 0.0
      %1203 = vmatpush1.msra.mxu0 0.0
      %1204 = vmatprep.subr.mxu0 0.0
      %1205 = vmatpush1.msra.mxu0 0.0
      %1206 = vmatprep.subr.mxu0 0.0
      %1207 = vmatpush1.msra.mxu0 0.0
      %1208 = vmatprep.subr.mxu0 0.0
      %1209 = vmatpush1.msra.mxu0 0.0
      %1210 = vmatprep.subr.mxu0 0.0
      %1211 = vmatpush1.msra.mxu0 0.0
      %1212 = vmatprep.subr.mxu0 0.0
      %1213 = vmatpush1.msra.mxu0 0.0
      %1214 = vmatprep.subr.mxu0 0.0
      %1215 = vmatpush1.msra.mxu0 0.0
      %1216 = vmatprep.subr.mxu0 0.0
      %1217 = vmatpush1.msra.mxu0 0.0
      %1218 = vmatprep.subr.mxu0 0.0
      %1219 = vmatpush1.msra.mxu0 0.0
      %1220 = vmatprep.subr.mxu0 0.0
      %1221 = vmatpush1.msra.mxu0 0.0
      %1222 = vmatprep.subr.mxu0 0.0
      %1223 = vmatpush1.msra.mxu0 0.0
      %1224 = vmatprep.subr.mxu0 0.0
      %1225 = vmatpush1.msra.mxu0 %v991
      %1226 = vmatprep.subr.mxu0 0.0
      %1227 = vmatpush1.msra.mxu0 %v990
      %1228 = vmatprep.subr.mxu0 0.0
      %1229 = vmatpush1.msra.mxu0 %v989
      %1230 = vmatprep.subr.mxu0 0.0
      %1231 = vmatpush1.msra.mxu0 %v988
      %1232 = vmatprep.subr.mxu0 0.0
      %1233 = vmatpush2.msra.mxu0 0.0
      %1234 = vmatprep.subr.mxu0 0.0
      %1235 = vmatpush2.msra.mxu0 0.0
      %1236 = vmatprep.subr.mxu0 0.0
      %1237 = vmatpush2.msra.mxu0 0.0
      %1238 = vmatprep.subr.mxu0 0.0
      %1239 = vmatpush2.msra.mxu0 0.0
      %1240 = vmatprep.subr.mxu0 0.0
      %1241 = vmatpush2.msra.mxu0 0.0
      %1242 = vmatprep.subr.mxu0 0.0
      %1243 = vmatpush2.msra.mxu0 0.0
      %1244 = vmatprep.subr.mxu0 0.0
      %1245 = vmatpush2.msra.mxu0 0.0
      %1246 = vmatprep.subr.mxu0 0.0
      %1247 = vmatpush2.msra.mxu0 0.0
      %1248 = vmatprep.subr.mxu0 0.0
      %1249 = vmatpush2.msra.mxu0 0.0
      %1250 = vmatprep.subr.mxu0 0.0
      %1251 = vmatpush2.msra.mxu0 0.0
      %1252 = vmatprep.subr.mxu0 0.0
      %1253 = vmatpush2.msra.mxu0 0.0
      %1254 = vmatprep.subr.mxu0 0.0
      %1255 = vmatpush2.msra.mxu0 0.0
      %1256 = vmatprep.subr.mxu0 0.0
      %1257 = vmatpush2.msra.mxu0 0.0
      %1258 = vmatprep.subr.mxu0 0.0
      %1259 = vmatpush2.msra.mxu0 0.0
      %1260 = vmatprep.subr.mxu0 0.0
      %1261 = vmatpush2.msra.mxu0 0.0
      %1262 = vmatprep.subr.mxu0 0.0
      %1263 = vmatpush2.msra.mxu0 0.0
      %1264 = vmatprep.mubr.f32.mxu0 0.0
      %1265 = vmatmul.mubr.f32.gmra.mxu0 %v1198
      %v1266 = vpop.f32.mrf.mxu0
      %v1267 = vadd.f32 0.0, %v1266
      %v1268 = vpop.f32.mrf.mxu0
      %1269 = vdwg.mxu0
      %v1270 = vadd.f32 %v1194, %v1267
      %v1271 = vmul.f32 %v1270, 0.5
      %v1272 = vtanh.pop %v1271
      %v1273 = vmul.f32 %v1272, 0.5
      %v1274 = vadd.f32 %v1273, 0.5
      %v1275 = vtanh.pop %v1270
      %v1276 = vmul.f32 %v1274, %v1187
      %1278 = vrot.lane.b32.xlu0 %v1275, 64
      %v1279 = vpop.permute.xlu0 %1278
      %v1281 = vmul.f32 %v1274, %v1279
      %1283 = vrot.lane.b32.xlu0 %v1281, 32
      %v1284 = vpop.permute.xlu0 %1283
      %v1286 = vadd.f32 %v1276, %v1284
      %v1287 = vtanh.pop %v1286
      %1289 = vrot.lane.b32.xlu0 %v1287, 64
      %v1290 = vpop.permute.xlu0 %1289
      %v1292 = vmul.f32 %v1274, %v1290
      %v1293 = vld [vmem:[%s763] sm:$0xff]
      %1295 = vrot.lane.b32.xlu0 %v1292, 32
      %v1296 = vpop.permute.xlu0 %1295
      %v1297 = vsel %vm451, %v1296, 0
      %1299 = vmatprep.subr.mxu0 0.0
      %1300 = vmatpush1.msra.mxu0 0.0
      %1301 = vmatprep.subr.mxu0 0.0
      %1302 = vmatpush1.msra.mxu0 0.0
      %1303 = vmatprep.subr.mxu0 0.0
      %1304 = vmatpush1.msra.mxu0 0.0
      %1305 = vmatprep.subr.mxu0 0.0
      %1306 = vmatpush1.msra.mxu0 0.0
      %1307 = vmatprep.subr.mxu0 0.0
      %1308 = vmatpush1.msra.mxu0 0.0
      %1309 = vmatprep.subr.mxu0 0.0
      %1310 = vmatpush1.msra.mxu0 0.0
      %1311 = vmatprep.subr.mxu0 0.0
      %1312 = vmatpush1.msra.mxu0 0.0
      %1313 = vmatprep.subr.mxu0 0.0
      %1314 = vmatpush1.msra.mxu0 0.0
      %1315 = vmatprep.subr.mxu0 0.0
      %1316 = vmatpush1.msra.mxu0 0.0
      %1317 = vmatprep.subr.mxu0 0.0
      %1318 = vmatpush1.msra.mxu0 0.0
      %1319 = vmatprep.subr.mxu0 0.0
      %1320 = vmatpush1.msra.mxu0 0.0
      %1321 = vmatprep.subr.mxu0 0.0
      %1322 = vmatpush1.msra.mxu0 0.0
      %1323 = vmatprep.subr.mxu0 0.0
      %1324 = vmatpush1.msra.mxu0 %v991
      %1325 = vmatprep.subr.mxu0 0.0
      %1326 = vmatpush1.msra.mxu0 %v990
      %1327 = vmatprep.subr.mxu0 0.0
      %1328 = vmatpush1.msra.mxu0 %v989
      %1329 = vmatprep.subr.mxu0 0.0
      %1330 = vmatpush1.msra.mxu0 %v988
      %1331 = vmatprep.subr.mxu0 0.0
      %1332 = vmatpush2.msra.mxu0 0.0
      %1333 = vmatprep.subr.mxu0 0.0
      %1334 = vmatpush2.msra.mxu0 0.0
      %1335 = vmatprep.subr.mxu0 0.0
      %1336 = vmatpush2.msra.mxu0 0.0
      %1337 = vmatprep.subr.mxu0 0.0
      %1338 = vmatpush2.msra.mxu0 0.0
      %1339 = vmatprep.subr.mxu0 0.0
      %1340 = vmatpush2.msra.mxu0 0.0
      %1341 = vmatprep.subr.mxu0 0.0
      %1342 = vmatpush2.msra.mxu0 0.0
      %1343 = vmatprep.subr.mxu0 0.0
      %1344 = vmatpush2.msra.mxu0 0.0
      %1345 = vmatprep.subr.mxu0 0.0
      %1346 = vmatpush2.msra.mxu0 0.0
      %1347 = vmatprep.subr.mxu0 0.0
      %1348 = vmatpush2.msra.mxu0 0.0
      %1349 = vmatprep.subr.mxu0 0.0
      %1350 = vmatpush2.msra.mxu0 0.0
      %1351 = vmatprep.subr.mxu0 0.0
      %1352 = vmatpush2.msra.mxu0 0.0
      %1353 = vmatprep.subr.mxu0 0.0
      %1354 = vmatpush2.msra.mxu0 0.0
      %1355 = vmatprep.subr.mxu0 0.0
      %1356 = vmatpush2.msra.mxu0 0.0
      %1357 = vmatprep.subr.mxu0 0.0
      %1358 = vmatpush2.msra.mxu0 0.0
      %1359 = vmatprep.subr.mxu0 0.0
      %1360 = vmatpush2.msra.mxu0 0.0
      %1361 = vmatprep.subr.mxu0 0.0
      %1362 = vmatpush2.msra.mxu0 0.0
      %1363 = vmatprep.mubr.f32.mxu0 0.0
      %1364 = vmatmul.mubr.f32.gmra.mxu0 %v1297
      %v1365 = vpop.f32.mrf.mxu0
      %v1366 = vadd.f32 0.0, %v1365
      %v1367 = vpop.f32.mrf.mxu0
      %1368 = vdwg.mxu0
      %v1369 = vadd.f32 %v1293, %v1366
      %v1370 = vmul.f32 %v1369, 0.5
      %v1371 = vtanh.pop %v1370
      %v1372 = vmul.f32 %v1371, 0.5
      %v1373 = vadd.f32 %v1372, 0.5
      %v1374 = vtanh.pop %v1369
      %v1375 = vmul.f32 %v1373, %v1286
      %1377 = vrot.lane.b32.xlu0 %v1374, 64
      %v1378 = vpop.permute.xlu0 %1377
      %v1380 = vmul.f32 %v1373, %v1378
      %1382 = vrot.lane.b32.xlu0 %v1380, 32
      %v1383 = vpop.permute.xlu0 %1382
      %v1385 = vadd.f32 %v1375, %v1383
      %v1386 = vtanh.pop %v1385
      %1388 = vrot.lane.b32.xlu0 %v1386, 64
      %v1389 = vpop.permute.xlu0 %1388
      %v1391 = vmul.f32 %v1373, %v1389
      %1393 = vrot.lane.b32.xlu0 %v1391, 32
      %v1394 = vpop.permute.xlu0 %1393
      %1396 = vst.msk [vmem:[#allocation6] sm:$0xff] %vm451, %v1394
      %1398 = vrot.lane.b32.xlu0 %v1385, 96
      %v1399 = vpop.permute.xlu0 %1398
      %1401 = vst.msk [vmem:[#allocation7] sm:$0xff] %vm451, %v1399
      %v1402 = vld [vmem:[%s7] sm:$0xff]
      %v1403 = vld [vmem:[%s7 + $0x8] sm:$0xff]
      %v1404 = vld [vmem:[%s7 + $0x10] sm:$0xff]
      %v1405 = vld [vmem:[%s7 + $0x18] sm:$0xff]
      %v1406 = vld [vmem:[%s8] sm:$0x1]
      %v1408 = vlaneseq
      %v1409 = vshrl.u32 %v1408, 7
      %v1410 = vsub.s32 0, %v1409
      %v1411 = vrot.slane %v1406, %v1410
      %v1413 = vsel %vm451, %v1394, 0
      %1415 = vmatprep.subr.mxu0 0.0
      %1416 = vmatpush1.msra.mxu0 0.0
      %1417 = vmatprep.subr.mxu0 0.0
      %1418 = vmatpush1.msra.mxu0 0.0
      %1419 = vmatprep.subr.mxu0 0.0
      %1420 = vmatpush1.msra.mxu0 0.0
      %1421 = vmatprep.subr.mxu0 0.0
      %1422 = vmatpush1.msra.mxu0 0.0
      %1423 = vmatprep.subr.mxu0 0.0
      %1424 = vmatpush1.msra.mxu0 0.0
      %1425 = vmatprep.subr.mxu0 0.0
      %1426 = vmatpush1.msra.mxu0 0.0
      %1427 = vmatprep.subr.mxu0 0.0
      %1428 = vmatpush1.msra.mxu0 0.0
      %1429 = vmatprep.subr.mxu0 0.0
      %1430 = vmatpush1.msra.mxu0 0.0
      %1431 = vmatprep.subr.mxu0 0.0
      %1432 = vmatpush1.msra.mxu0 0.0
      %1433 = vmatprep.subr.mxu0 0.0
      %1434 = vmatpush1.msra.mxu0 0.0
      %1435 = vmatprep.subr.mxu0 0.0
      %1436 = vmatpush1.msra.mxu0 0.0
      %1437 = vmatprep.subr.mxu0 0.0
      %1438 = vmatpush1.msra.mxu0 0.0
      %1439 = vmatprep.subr.mxu0 0.0
      %1440 = vmatpush1.msra.mxu0 %v1405
      %1441 = vmatprep.subr.mxu0 0.0
      %1442 = vmatpush1.msra.mxu0 %v1404
      %1443 = vmatprep.subr.mxu0 0.0
      %1444 = vmatpush1.msra.mxu0 %v1403
      %1445 = vmatprep.subr.mxu0 0.0
      %1446 = vmatpush1.msra.mxu0 %v1402
      %1447 = vmatprep.subr.mxu0 0.0
      %1448 = vmatpush2.msra.mxu0 0.0
      %1449 = vmatprep.subr.mxu0 0.0
      %1450 = vmatpush2.msra.mxu0 0.0
      %1451 = vmatprep.subr.mxu0 0.0
      %1452 = vmatpush2.msra.mxu0 0.0
      %1453 = vmatprep.subr.mxu0 0.0
      %1454 = vmatpush2.msra.mxu0 0.0
      %1455 = vmatprep.subr.mxu0 0.0
      %1456 = vmatpush2.msra.mxu0 0.0
      %1457 = vmatprep.subr.mxu0 0.0
      %1458 = vmatpush2.msra.mxu0 0.0
      %1459 = vmatprep.subr.mxu0 0.0
      %1460 = vmatpush2.msra.mxu0 0.0
      %1461 = vmatprep.subr.mxu0 0.0
      %1462 = vmatpush2.msra.mxu0 0.0
      %1463 = vmatprep.subr.mxu0 0.0
      %1464 = vmatpush2.msra.mxu0 0.0
      %1465 = vmatprep.subr.mxu0 0.0
      %1466 = vmatpush2.msra.mxu0 0.0
      %1467 = vmatprep.subr.mxu0 0.0
      %1468 = vmatpush2.msra.mxu0 0.0
      %1469 = vmatprep.subr.mxu0 0.0
      %1470 = vmatpush2.msra.mxu0 0.0
      %1471 = vmatprep.subr.mxu0 0.0
      %1472 = vmatpush2.msra.mxu0 0.0
      %1473 = vmatprep.subr.mxu0 0.0
      %1474 = vmatpush2.msra.mxu0 0.0
      %1475 = vmatprep.subr.mxu0 0.0
      %1476 = vmatpush2.msra.mxu0 0.0
      %1477 = vmatprep.subr.mxu0 0.0
      %1478 = vmatpush2.msra.mxu0 0.0
      %1479 = vmatprep.mubr.f32.mxu0 0.0
      %1480 = vmatmul.mubr.f32.gmra.mxu0 %v1413
      %v1481 = vpop.f32.mrf.mxu0
      %v1482 = vadd.f32 %v1411, %v1481
      %v1483 = vpop.f32.mrf.mxu0
      %1484 = vdwg.mxu0
      %1485 = vst [vmem:[%s9] sm:$0xff] %v1482
      // Predicated region
      $region61: #{lstm_forward.1} parent=55 // pred_check
        %p1486 = pneg %p227
      $region62: #{lstm_forward.1} parent=55 // pred_check_branch
        %1488 = sbr.rel (%p1486) target = $region64
      $region63: #{lstm_forward.1} parent=55 // pred_region
        _
      $region64: #{lstm_forward.1} parent=55 // pred_fallthru
        _
      // Predicated region
      $region65: #{lstm_forward.1} parent=55 // pred_check
        %p1489 = pneg %p227
      $region66: #{lstm_forward.1} parent=55 // pred_check_branch
        %1491 = sbr.rel (%p1489) target = $region68
      $region67: #{lstm_forward.1} parent=55 // pred_region
        _
      $region68: #{lstm_forward.1} parent=55 // pred_fallthru
        _
    $region56: #{lstm_forward.1} parent=5 // pred_fallthru
      _
    %p1492 = scmp.le.s32.totalorder 2, %s15
    // Predicated region
    $region69: #{lstm_forward.1} parent=5 // pred_check
      %p1493 = pneg %p1492
    $region70: #{lstm_forward.1} parent=5 // pred_check_branch
      %1495 = sbr.rel (%p1493) target = $region72
    $region71: #{lstm_forward.1} parent=5 // pred_region
      %s1496 = ssub.s32 %s15, 2
    $region72: #{lstm_forward.1} parent=5 // pred_fallthru
      _
  $region6: #{lstm_forward.1} parent=0 // loop_footer
    %s19 = sadd.s32 1, %s15
  $region7: #{lstm_forward.1} parent=0 // loop_footer_branch
    %14 = sbr.rel target = $region3
  $region8: #{lstm_forward.1} parent=0 // loop_exit
    _

</llo_original>
